<compile_context>
chip_gen: v7x
topology: tpu7x:2x2x1
jax: 0.10.0
libtpu: 0.0.40
codegen_flags: <defaults>
</compile_context>

<pallas_src>
import math

import jax
import jax.numpy as jnp
import numpy as np
from jax import lax
from jax.experimental import pallas as pl
from jax.experimental.pallas import tpu as pltpu

B, S, D = 2, 8, 32          # batch, sequence, d_model
H = 4                       # heads
DK = D // H                 # head dim
DFF = 64                    # feed-forward hidden dim
EPS = 1e-6                  # LayerNormalization eps
BS = B * S                  # flattened (batch*seq) rows


def _layernorm(v, gamma, beta):
    # Matches torch module: unbiased std (Bessel, N-1) and (std + eps) denom.
    mean = jnp.mean(v, axis=-1, keepdims=True)
    cen = v - mean
    var = jnp.sum(cen * cen, axis=-1, keepdims=True) / (v.shape[-1] - 1)
    std = jnp.sqrt(var)
    inv = pl.reciprocal(std + EPS, approx=True)      # EUP slot, not a VPU divide
    return gamma * cen * inv + beta


def encoder_block_kernel(x_ref, mask_ref, wqkv_ref, wo_ref, w1_ref, w2_ref,
                         p32_ref, b1_ref, o_ref):
    x = x_ref[...]                                   # (B*S, D) activation slab

    # Packed small params: rows = [gamma1, beta1, gamma2, beta2, b2]
    g1 = p32_ref[0:1, :]
    be1 = p32_ref[1:2, :]
    g2 = p32_ref[2:3, :]
    be2 = p32_ref[3:4, :]
    b2 = p32_ref[4:5, :]
    b1 = b1_ref[...]                                 # (1, DFF)

    # ---- sublayer 1: x + Attention(LayerNorm(x)) ----
    y = _layernorm(x, g1, be1)
    qkv = jnp.dot(y, wqkv_ref[...],                  # (B*S, 3D), one MXU push
                  preferred_element_type=jnp.float32)

    scale = 1.0 / math.sqrt(DK)
    for b in range(B):                               # static unroll (B tiny)
        # Additive mask bias, hoisted out of the head loop.
        neg = jnp.where(mask_ref[b] == 0, -1e9, 0.0)          # (S, S) f32
        acc_b = x[b * S:(b + 1) * S, :]              # residual folded in
        for h in range(H):                           # static unroll (H tiny)
            qs = qkv[b * S:(b + 1) * S, h * DK:(h + 1) * DK]
            ks = qkv[b * S:(b + 1) * S, D + h * DK:D + (h + 1) * DK]
            vs = qkv[b * S:(b + 1) * S, 2 * D + h * DK:2 * D + (h + 1) * DK]
            # q @ k^T via contracting dim 1 of both -> no XLU transpose.
            scores = lax.dot_general(
                qs, ks, (((1,), (1,)), ((), ())),
                preferred_element_type=jnp.float32) * scale
            scores = scores + neg
            scores = scores - jnp.max(scores, axis=-1, keepdims=True)
            p = jnp.exp(scores)
            p = p * pl.reciprocal(jnp.sum(p, axis=-1, keepdims=True),
                                  approx=True)
            head = jnp.dot(p, vs, preferred_element_type=jnp.float32)  # (S, DK)
            # Project this head with a static slice of w_out and accumulate
            # (replaces lane-axis concatenate + one (S,D)@(D,D) projection).
            acc_b = acc_b + jnp.dot(head, wo_ref[h * DK:(h + 1) * DK, :],
                                    preferred_element_type=jnp.float32)
        o_ref[b * S:(b + 1) * S, :] = acc_b          # o_ref doubles as x1 buffer

    # ---- sublayer 2: x1 + FFN(LayerNorm(x1)) ----
    x1 = o_ref[...]
    y2 = _layernorm(x1, g2, be2)
    hdn = jnp.dot(y2, w1_ref[...], preferred_element_type=jnp.float32) + b1
    hdn = jnp.maximum(hdn, 0.0)
    ff = jnp.dot(hdn, w2_ref[...], preferred_element_type=jnp.float32) + b2
    # TODO(synk): nn.Dropout layers are treated as identity (eval-mode semantics).
    o_ref[...] = x1 + ff


def encoder_block(x, mask, fused_params):
    wqkv, wo, w1, w2, p32, b1 = fused_params
    vmem = lambda: pl.BlockSpec(memory_space=pltpu.MemorySpace.VMEM)
    out = pl.pallas_call(
        encoder_block_kernel,
        out_shape=jax.ShapeDtypeStruct((BS, D), jnp.float32),
        in_specs=[vmem() for _ in range(8)],
        out_specs=vmem(),
    )(x.reshape(BS, D), mask, wqkv, wo, w1, w2, p32, b1)
    return out.reshape(B, S, D)


def reference(x, mask, params):
    (g1, be1, wq, wk, wv, wo, g2, be2, w1, b1, w2, b2) = params

    def ln(v, g, be):
        mean = v.mean(-1, keepdims=True)
        std = jnp.sqrt(((v - mean) ** 2).sum(-1, keepdims=True) / (v.shape[-1] - 1))
        return g * (v - mean) / (std + EPS) + be

    y = ln(x, g1[0], be1[0])
    q = (y @ wq).reshape(B, S, H, DK).transpose(0, 2, 1, 3)
    k = (y @ wk).reshape(B, S, H, DK).transpose(0, 2, 1, 3)
    v = (y @ wv).reshape(B, S, H, DK).transpose(0, 2, 1, 3)
    scores = jnp.einsum("bhqd,bhkd->bhqk", q, k) / math.sqrt(DK)
    scores = jnp.where(mask[:, None, :, :] == 0, -1e9, scores)
    p = jax.nn.softmax(scores, axis=-1)
    attn = jnp.einsum("bhqk,bhkd->bhqd", p, v).transpose(0, 2, 1, 3).reshape(B, S, D)
    x1 = x + attn @ wo
    y2 = ln(x1, g2[0], be2[0])
    ff = jnp.maximum(y2 @ w1 + b1[0], 0.0) @ w2 + b2[0]
    return x1 + ff


if __name__ == "__main__":
    key = jax.random.PRNGKey(0)
    ks = jax.random.split(key, 16)
    sc = 0.05

    x = jax.random.normal(ks[0], (B, S, D), jnp.float32)
    causal = (jnp.arange(S)[None, :] <= jnp.arange(S)[:, None]).astype(jnp.int32)
    mask = jnp.broadcast_to(causal, (B, S, S))

    # Parameters (deterministic). Linear weights stored as (in, out).
    wq = sc * jax.random.normal(ks[1], (D, D), jnp.float32)
    wk = sc * jax.random.normal(ks[2], (D, D), jnp.float32)
    wv = sc * jax.random.normal(ks[3], (D, D), jnp.float32)
    wo = sc * jax.random.normal(ks[4], (D, D), jnp.float32)
    w1 = sc * jax.random.normal(ks[5], (D, DFF), jnp.float32)
    b1 = sc * jax.random.normal(ks[6], (1, DFF), jnp.float32)
    w2 = sc * jax.random.normal(ks[7], (DFF, D), jnp.float32)
    b2 = sc * jax.random.normal(ks[8], (1, D), jnp.float32)
    g1 = 1.0 + 0.1 * jax.random.normal(ks[9], (1, D), jnp.float32)
    be1 = 0.1 * jax.random.normal(ks[10], (1, D), jnp.float32)
    g2 = 1.0 + 0.1 * jax.random.normal(ks[11], (1, D), jnp.float32)
    be2 = 0.1 * jax.random.normal(ks[12], (1, D), jnp.float32)

    # Host-side (free) parameter fusion / packing for the kernel.
    wqkv = jnp.concatenate([wq, wk, wv], axis=1)                 # (D, 3D)
    p32 = jnp.concatenate([g1, be1, g2, be2, b2], axis=0)        # (5, D)
    fused_params = (wqkv, wo, w1, w2, p32, b1)

    ref_params = (g1, be1, wq, wk, wv, wo, g2, be2, w1, b1, w2, b2)

    out = jax.block_until_ready(encoder_block(x, mask, fused_params))
    ref = jax.block_until_ready(reference(x, mask, ref_params))
    np.testing.assert_allclose(np.asarray(out), np.asarray(ref), atol=2e-3, rtol=2e-3)

    print("KERNEL_OK")
</pallas_src>

<mosaic_0001>
module attributes {stable_mosaic.version = 11 : i64} {
  func.func @encoder_block_kernel(%arg0: memref<16x32xf32, #tpu.memory_space<vmem>>, %arg1: memref<2x8x8xi32, #tpu.memory_space<vmem>>, %arg2: memref<32x96xf32, #tpu.memory_space<vmem>>, %arg3: memref<32x32xf32, #tpu.memory_space<vmem>>, %arg4: memref<32x64xf32, #tpu.memory_space<vmem>>, %arg5: memref<64x32xf32, #tpu.memory_space<vmem>>, %arg6: memref<5x32xf32, #tpu.memory_space<vmem>>, %arg7: memref<1x64xf32, #tpu.memory_space<vmem>>, %arg8: memref<16x32xf32, #tpu.memory_space<vmem>>) attributes {dimension_semantics = [], scalar_prefetch = 0 : i64, scratch_operands = 0 : i64, tpu.core_type = #tpu.core_type<tc>} {
    %c0 = arith.constant 0 : index
    %c0_0 = arith.constant 0 : index
    %0 = vector.load %arg0[%c0, %c0_0] : memref<16x32xf32, #tpu.memory_space<vmem>>, vector<16x32xf32>
    %c0_1 = arith.constant 0 : index
    %c0_2 = arith.constant 0 : index
    %1 = vector.load %arg6[%c0_1, %c0_2] : memref<5x32xf32, #tpu.memory_space<vmem>>, vector<1x32xf32>
    %c1 = arith.constant 1 : index
    %c0_3 = arith.constant 0 : index
    %2 = vector.load %arg6[%c1, %c0_3] : memref<5x32xf32, #tpu.memory_space<vmem>>, vector<1x32xf32>
    %c2 = arith.constant 2 : index
    %c0_4 = arith.constant 0 : index
    %3 = vector.load %arg6[%c2, %c0_4] : memref<5x32xf32, #tpu.memory_space<vmem>>, vector<1x32xf32>
    %c3 = arith.constant 3 : index
    %c0_5 = arith.constant 0 : index
    %4 = vector.load %arg6[%c3, %c0_5] : memref<5x32xf32, #tpu.memory_space<vmem>>, vector<1x32xf32>
    %c4 = arith.constant 4 : index
    %c0_6 = arith.constant 0 : index
    %5 = vector.load %arg6[%c4, %c0_6] : memref<5x32xf32, #tpu.memory_space<vmem>>, vector<1x32xf32>
    %c0_7 = arith.constant 0 : index
    %c0_8 = arith.constant 0 : index
    %6 = vector.load %arg7[%c0_7, %c0_8] : memref<1x64xf32, #tpu.memory_space<vmem>>, vector<1x64xf32>
    %cst = arith.constant dense<0.000000e+00> : vector<16xf32>
    %7 = vector.multi_reduction <add>, %0, %cst [1] : vector<16x32xf32> to vector<16xf32>
    %8 = vector.shape_cast %7 : vector<16xf32> to vector<16x1xf32>
    %cst_9 = arith.constant 3.200000e+01 : f32
    %9 = vector.broadcast %cst_9 : f32 to vector<16x1xf32>
    %10 = arith.divf %8, %9 : vector<16x1xf32>
    %11 = vector.broadcast %10 : vector<16x1xf32> to vector<16x32xf32>
    %12 = arith.subf %0, %11 : vector<16x32xf32>
    %13 = arith.mulf %12, %12 : vector<16x32xf32>
    %cst_10 = arith.constant dense<0.000000e+00> : vector<16xf32>
    %14 = vector.multi_reduction <add>, %13, %cst_10 [1] : vector<16x32xf32> to vector<16xf32>
    %15 = vector.shape_cast %14 : vector<16xf32> to vector<16x1xf32>
    %cst_11 = arith.constant 3.100000e+01 : f32
    %16 = vector.broadcast %cst_11 : f32 to vector<16x1xf32>
    %17 = arith.divf %15, %16 : vector<16x1xf32>
    %18 = math.sqrt %17 : vector<16x1xf32>
    %cst_12 = arith.constant 9.99999997E-7 : f32
    %19 = vector.broadcast %cst_12 : f32 to vector<16x1xf32>
    %20 = arith.addf %18, %19 : vector<16x1xf32>
    %21 = tpu.reciprocal %20 {approx = true} : vector<16x1xf32> -> vector<16x1xf32>
    %22 = vector.broadcast %1 : vector<1x32xf32> to vector<16x32xf32>
    %23 = arith.mulf %22, %12 : vector<16x32xf32>
    %24 = vector.broadcast %21 : vector<16x1xf32> to vector<16x32xf32>
    %25 = arith.mulf %23, %24 : vector<16x32xf32>
    %26 = vector.broadcast %2 : vector<1x32xf32> to vector<16x32xf32>
    %27 = arith.addf %25, %26 : vector<16x32xf32>
    %c0_13 = arith.constant 0 : index
    %c0_14 = arith.constant 0 : index
    %28 = vector.load %arg2[%c0_13, %c0_14] : memref<32x96xf32, #tpu.memory_space<vmem>>, vector<32x96xf32>
    %cst_15 = arith.constant dense<0.000000e+00> : vector<16x96xf32>
    %29 = tpu.matmul %27, %28, %cst_15 {dimension_numbers = #tpu.dot_dimension_numbers<[1], [0], [0], [1], [0, 0, 1, 1], [], []>} : vector<16x32xf32>, vector<32x96xf32>, vector<16x96xf32> -> vector<16x96xf32>
    %c0_16 = arith.constant 0 : index
    %c0_17 = arith.constant 0 : index
    %c0_18 = arith.constant 0 : index
    %30 = vector.load %arg1[%c0_16, %c0_17, %c0_18] : memref<2x8x8xi32, #tpu.memory_space<vmem>>, vector<1x8x8xi32>
    %31 = vector.shape_cast %30 : vector<1x8x8xi32> to vector<8x8xi32>
    %c0_i32 = arith.constant 0 : i32
    %32 = vector.broadcast %c0_i32 : i32 to vector<8x8xi32>
    %33 = arith.cmpi eq, %31, %32 : vector<8x8xi32>
    %cst_19 = arith.constant -1.000000e+09 : f32
    %cst_20 = arith.constant 0.000000e+00 : f32
    %34 = vector.broadcast %cst_19 : f32 to vector<8x8xf32>
    %35 = vector.broadcast %cst_20 : f32 to vector<8x8xf32>
    %36 = arith.select %33, %34, %35 : vector<8x8xi1>, vector<8x8xf32>
    %37 = vector.extract_strided_slice %0 {offsets = [0, 0], sizes = [8, 32], strides = [1, 1]} : vector<16x32xf32> to vector<8x32xf32>
    %38 = vector.extract_strided_slice %29 {offsets = [0, 0], sizes = [8, 8], strides = [1, 1]} : vector<16x96xf32> to vector<8x8xf32>
    %39 = vector.extract_strided_slice %29 {offsets = [0, 32], sizes = [8, 8], strides = [1, 1]} : vector<16x96xf32> to vector<8x8xf32>
    %40 = vector.extract_strided_slice %29 {offsets = [0, 64], sizes = [8, 8], strides = [1, 1]} : vector<16x96xf32> to vector<8x8xf32>
    %cst_21 = arith.constant dense<0.000000e+00> : vector<8x8xf32>
    %41 = tpu.matmul %38, %39, %cst_21 {dimension_numbers = #tpu.dot_dimension_numbers<[1], [1], [0], [0], [0, 0, 1, 0], [], []>} : vector<8x8xf32>, vector<8x8xf32>, vector<8x8xf32> -> vector<8x8xf32>
    %cst_22 = arith.constant 0.353553385 : f32
    %42 = vector.broadcast %cst_22 : f32 to vector<8x8xf32>
    %43 = arith.mulf %41, %42 : vector<8x8xf32>
    %44 = arith.addf %43, %36 : vector<8x8xf32>
    %cst_23 = arith.constant dense<0xFF800000> : vector<8xf32>
    %45 = vector.multi_reduction <maximumf>, %44, %cst_23 [1] : vector<8x8xf32> to vector<8xf32>
    %46 = vector.shape_cast %45 : vector<8xf32> to vector<8x1xf32>
    %47 = vector.broadcast %46 : vector<8x1xf32> to vector<8x8xf32>
    %48 = arith.subf %44, %47 : vector<8x8xf32>
    %49 = math.exp %48 : vector<8x8xf32>
    %cst_24 = arith.constant dense<0.000000e+00> : vector<8xf32>
    %50 = vector.multi_reduction <add>, %49, %cst_24 [1] : vector<8x8xf32> to vector<8xf32>
    %51 = vector.shape_cast %50 : vector<8xf32> to vector<8x1xf32>
    %52 = tpu.reciprocal %51 {approx = true} : vector<8x1xf32> -> vector<8x1xf32>
    %53 = vector.broadcast %52 : vector<8x1xf32> to vector<8x8xf32>
    %54 = arith.mulf %49, %53 : vector<8x8xf32>
    %cst_25 = arith.constant dense<0.000000e+00> : vector<8x8xf32>
    %55 = tpu.matmul %54, %40, %cst_25 {dimension_numbers = #tpu.dot_dimension_numbers<[1], [0], [0], [1], [0, 0, 1, 1], [], []>} : vector<8x8xf32>, vector<8x8xf32>, vector<8x8xf32> -> vector<8x8xf32>
    %c0_26 = arith.constant 0 : index
    %c0_27 = arith.constant 0 : index
    %56 = vector.load %arg3[%c0_26, %c0_27] : memref<32x32xf32, #tpu.memory_space<vmem>>, vector<8x32xf32>
    %cst_28 = arith.constant dense<0.000000e+00> : vector<8x32xf32>
    %57 = tpu.matmul %55, %56, %cst_28 {dimension_numbers = #tpu.dot_dimension_numbers<[1], [0], [0], [1], [0, 0, 1, 1], [], []>} : vector<8x8xf32>, vector<8x32xf32>, vector<8x32xf32> -> vector<8x32xf32>
    %58 = arith.addf %37, %57 : vector<8x32xf32>
    %59 = vector.extract_strided_slice %29 {offsets = [0, 8], sizes = [8, 8], strides = [1, 1]} : vector<16x96xf32> to vector<8x8xf32>
    %60 = vector.extract_strided_slice %29 {offsets = [0, 40], sizes = [8, 8], strides = [1, 1]} : vector<16x96xf32> to vector<8x8xf32>
    %61 = vector.extract_strided_slice %29 {offsets = [0, 72], sizes = [8, 8], strides = [1, 1]} : vector<16x96xf32> to vector<8x8xf32>
    %cst_29 = arith.constant dense<0.000000e+00> : vector<8x8xf32>
    %62 = tpu.matmul %59, %60, %cst_29 {dimension_numbers = #tpu.dot_dimension_numbers<[1], [1], [0], [0], [0, 0, 1, 0], [], []>} : vector<8x8xf32>, vector<8x8xf32>, vector<8x8xf32> -> vector<8x8xf32>
    %cst_30 = arith.constant 0.353553385 : f32
    %63 = vector.broadcast %cst_30 : f32 to vector<8x8xf32>
    %64 = arith.mulf %62, %63 : vector<8x8xf32>
    %65 = arith.addf %64, %36 : vector<8x8xf32>
    %cst_31 = arith.constant dense<0xFF800000> : vector<8xf32>
    %66 = vector.multi_reduction <maximumf>, %65, %cst_31 [1] : vector<8x8xf32> to vector<8xf32>
    %67 = vector.shape_cast %66 : vector<8xf32> to vector<8x1xf32>
    %68 = vector.broadcast %67 : vector<8x1xf32> to vector<8x8xf32>
    %69 = arith.subf %65, %68 : vector<8x8xf32>
    %70 = math.exp %69 : vector<8x8xf32>
    %cst_32 = arith.constant dense<0.000000e+00> : vector<8xf32>
    %71 = vector.multi_reduction <add>, %70, %cst_32 [1] : vector<8x8xf32> to vector<8xf32>
    %72 = vector.shape_cast %71 : vector<8xf32> to vector<8x1xf32>
    %73 = tpu.reciprocal %72 {approx = true} : vector<8x1xf32> -> vector<8x1xf32>
    %74 = vector.broadcast %73 : vector<8x1xf32> to vector<8x8xf32>
    %75 = arith.mulf %70, %74 : vector<8x8xf32>
    %cst_33 = arith.constant dense<0.000000e+00> : vector<8x8xf32>
    %76 = tpu.matmul %75, %61, %cst_33 {dimension_numbers = #tpu.dot_dimension_numbers<[1], [0], [0], [1], [0, 0, 1, 1], [], []>} : vector<8x8xf32>, vector<8x8xf32>, vector<8x8xf32> -> vector<8x8xf32>
    %c8 = arith.constant 8 : index
    %c0_34 = arith.constant 0 : index
    %77 = vector.load %arg3[%c8, %c0_34] : memref<32x32xf32, #tpu.memory_space<vmem>>, vector<8x32xf32>
    %cst_35 = arith.constant dense<0.000000e+00> : vector<8x32xf32>
    %78 = tpu.matmul %76, %77, %cst_35 {dimension_numbers = #tpu.dot_dimension_numbers<[1], [0], [0], [1], [0, 0, 1, 1], [], []>} : vector<8x8xf32>, vector<8x32xf32>, vector<8x32xf32> -> vector<8x32xf32>
    %79 = arith.addf %58, %78 : vector<8x32xf32>
    %80 = vector.extract_strided_slice %29 {offsets = [0, 16], sizes = [8, 8], strides = [1, 1]} : vector<16x96xf32> to vector<8x8xf32>
    %81 = vector.extract_strided_slice %29 {offsets = [0, 48], sizes = [8, 8], strides = [1, 1]} : vector<16x96xf32> to vector<8x8xf32>
    %82 = vector.extract_strided_slice %29 {offsets = [0, 80], sizes = [8, 8], strides = [1, 1]} : vector<16x96xf32> to vector<8x8xf32>
    %cst_36 = arith.constant dense<0.000000e+00> : vector<8x8xf32>
    %83 = tpu.matmul %80, %81, %cst_36 {dimension_numbers = #tpu.dot_dimension_numbers<[1], [1], [0], [0], [0, 0, 1, 0], [], []>} : vector<8x8xf32>, vector<8x8xf32>, vector<8x8xf32> -> vector<8x8xf32>
    %cst_37 = arith.constant 0.353553385 : f32
    %84 = vector.broadcast %cst_37 : f32 to vector<8x8xf32>
    %85 = arith.mulf %83, %84 : vector<8x8xf32>
    %86 = arith.addf %85, %36 : vector<8x8xf32>
    %cst_38 = arith.constant dense<0xFF800000> : vector<8xf32>
    %87 = vector.multi_reduction <maximumf>, %86, %cst_38 [1] : vector<8x8xf32> to vector<8xf32>
    %88 = vector.shape_cast %87 : vector<8xf32> to vector<8x1xf32>
    %89 = vector.broadcast %88 : vector<8x1xf32> to vector<8x8xf32>
    %90 = arith.subf %86, %89 : vector<8x8xf32>
    %91 = math.exp %90 : vector<8x8xf32>
    %cst_39 = arith.constant dense<0.000000e+00> : vector<8xf32>
    %92 = vector.multi_reduction <add>, %91, %cst_39 [1] : vector<8x8xf32> to vector<8xf32>
    %93 = vector.shape_cast %92 : vector<8xf32> to vector<8x1xf32>
    %94 = tpu.reciprocal %93 {approx = true} : vector<8x1xf32> -> vector<8x1xf32>
    %95 = vector.broadcast %94 : vector<8x1xf32> to vector<8x8xf32>
    %96 = arith.mulf %91, %95 : vector<8x8xf32>
    %cst_40 = arith.constant dense<0.000000e+00> : vector<8x8xf32>
    %97 = tpu.matmul %96, %82, %cst_40 {dimension_numbers = #tpu.dot_dimension_numbers<[1], [0], [0], [1], [0, 0, 1, 1], [], []>} : vector<8x8xf32>, vector<8x8xf32>, vector<8x8xf32> -> vector<8x8xf32>
    %c16 = arith.constant 16 : index
    %c0_41 = arith.constant 0 : index
    %98 = vector.load %arg3[%c16, %c0_41] : memref<32x32xf32, #tpu.memory_space<vmem>>, vector<8x32xf32>
    %cst_42 = arith.constant dense<0.000000e+00> : vector<8x32xf32>
    %99 = tpu.matmul %97, %98, %cst_42 {dimension_numbers = #tpu.dot_dimension_numbers<[1], [0], [0], [1], [0, 0, 1, 1], [], []>} : vector<8x8xf32>, vector<8x32xf32>, vector<8x32xf32> -> vector<8x32xf32>
    %100 = arith.addf %79, %99 : vector<8x32xf32>
    %101 = vector.extract_strided_slice %29 {offsets = [0, 24], sizes = [8, 8], strides = [1, 1]} : vector<16x96xf32> to vector<8x8xf32>
    %102 = vector.extract_strided_slice %29 {offsets = [0, 56], sizes = [8, 8], strides = [1, 1]} : vector<16x96xf32> to vector<8x8xf32>
    %103 = vector.extract_strided_slice %29 {offsets = [0, 88], sizes = [8, 8], strides = [1, 1]} : vector<16x96xf32> to vector<8x8xf32>
    %cst_43 = arith.constant dense<0.000000e+00> : vector<8x8xf32>
    %104 = tpu.matmul %101, %102, %cst_43 {dimension_numbers = #tpu.dot_dimension_numbers<[1], [1], [0], [0], [0, 0, 1, 0], [], []>} : vector<8x8xf32>, vector<8x8xf32>, vector<8x8xf32> -> vector<8x8xf32>
    %cst_44 = arith.constant 0.353553385 : f32
    %105 = vector.broadcast %cst_44 : f32 to vector<8x8xf32>
    %106 = arith.mulf %104, %105 : vector<8x8xf32>
    %107 = arith.addf %106, %36 : vector<8x8xf32>
    %cst_45 = arith.constant dense<0xFF800000> : vector<8xf32>
    %108 = vector.multi_reduction <maximumf>, %107, %cst_45 [1] : vector<8x8xf32> to vector<8xf32>
    %109 = vector.shape_cast %108 : vector<8xf32> to vector<8x1xf32>
    %110 = vector.broadcast %109 : vector<8x1xf32> to vector<8x8xf32>
    %111 = arith.subf %107, %110 : vector<8x8xf32>
    %112 = math.exp %111 : vector<8x8xf32>
    %cst_46 = arith.constant dense<0.000000e+00> : vector<8xf32>
    %113 = vector.multi_reduction <add>, %112, %cst_46 [1] : vector<8x8xf32> to vector<8xf32>
    %114 = vector.shape_cast %113 : vector<8xf32> to vector<8x1xf32>
    %115 = tpu.reciprocal %114 {approx = true} : vector<8x1xf32> -> vector<8x1xf32>
    %116 = vector.broadcast %115 : vector<8x1xf32> to vector<8x8xf32>
    %117 = arith.mulf %112, %116 : vector<8x8xf32>
    %cst_47 = arith.constant dense<0.000000e+00> : vector<8x8xf32>
    %118 = tpu.matmul %117, %103, %cst_47 {dimension_numbers = #tpu.dot_dimension_numbers<[1], [0], [0], [1], [0, 0, 1, 1], [], []>} : vector<8x8xf32>, vector<8x8xf32>, vector<8x8xf32> -> vector<8x8xf32>
    %c24 = arith.constant 24 : index
    %c0_48 = arith.constant 0 : index
    %119 = vector.load %arg3[%c24, %c0_48] : memref<32x32xf32, #tpu.memory_space<vmem>>, vector<8x32xf32>
    %cst_49 = arith.constant dense<0.000000e+00> : vector<8x32xf32>
    %120 = tpu.matmul %118, %119, %cst_49 {dimension_numbers = #tpu.dot_dimension_numbers<[1], [0], [0], [1], [0, 0, 1, 1], [], []>} : vector<8x8xf32>, vector<8x32xf32>, vector<8x32xf32> -> vector<8x32xf32>
    %121 = arith.addf %100, %120 : vector<8x32xf32>
    %c0_50 = arith.constant 0 : index
    %c0_51 = arith.constant 0 : index
    %122 = vector.load %arg8[%c0_50, %c0_51] : memref<16x32xf32, #tpu.memory_space<vmem>>, vector<8x32xf32>
    tpu.vector_store %arg8[%c0_50, %c0_51], %121 {strides = array<i32>} : memref<16x32xf32, #tpu.memory_space<vmem>>, vector<8x32xf32>,
    %c1_52 = arith.constant 1 : index
    %c0_53 = arith.constant 0 : index
    %c0_54 = arith.constant 0 : index
    %123 = vector.load %arg1[%c1_52, %c0_53, %c0_54] : memref<2x8x8xi32, #tpu.memory_space<vmem>>, vector<1x8x8xi32>
    %124 = vector.shape_cast %123 : vector<1x8x8xi32> to vector<8x8xi32>
    %c0_i32_55 = arith.constant 0 : i32
    %125 = vector.broadcast %c0_i32_55 : i32 to vector<8x8xi32>
    %126 = arith.cmpi eq, %124, %125 : vector<8x8xi32>
    %cst_56 = arith.constant -1.000000e+09 : f32
    %cst_57 = arith.constant 0.000000e+00 : f32
    %127 = vector.broadcast %cst_56 : f32 to vector<8x8xf32>
    %128 = vector.broadcast %cst_57 : f32 to vector<8x8xf32>
    %129 = arith.select %126, %127, %128 : vector<8x8xi1>, vector<8x8xf32>
    %130 = vector.extract_strided_slice %0 {offsets = [8, 0], sizes = [8, 32], strides = [1, 1]} : vector<16x32xf32> to vector<8x32xf32>
    %131 = vector.extract_strided_slice %29 {offsets = [8, 0], sizes = [8, 8], strides = [1, 1]} : vector<16x96xf32> to vector<8x8xf32>
    %132 = vector.extract_strided_slice %29 {offsets = [8, 32], sizes = [8, 8], strides = [1, 1]} : vector<16x96xf32> to vector<8x8xf32>
    %133 = vector.extract_strided_slice %29 {offsets = [8, 64], sizes = [8, 8], strides = [1, 1]} : vector<16x96xf32> to vector<8x8xf32>
    %cst_58 = arith.constant dense<0.000000e+00> : vector<8x8xf32>
    %134 = tpu.matmul %131, %132, %cst_58 {dimension_numbers = #tpu.dot_dimension_numbers<[1], [1], [0], [0], [0, 0, 1, 0], [], []>} : vector<8x8xf32>, vector<8x8xf32>, vector<8x8xf32> -> vector<8x8xf32>
    %cst_59 = arith.constant 0.353553385 : f32
    %135 = vector.broadcast %cst_59 : f32 to vector<8x8xf32>
    %136 = arith.mulf %134, %135 : vector<8x8xf32>
    %137 = arith.addf %136, %129 : vector<8x8xf32>
    %cst_60 = arith.constant dense<0xFF800000> : vector<8xf32>
    %138 = vector.multi_reduction <maximumf>, %137, %cst_60 [1] : vector<8x8xf32> to vector<8xf32>
    %139 = vector.shape_cast %138 : vector<8xf32> to vector<8x1xf32>
    %140 = vector.broadcast %139 : vector<8x1xf32> to vector<8x8xf32>
    %141 = arith.subf %137, %140 : vector<8x8xf32>
    %142 = math.exp %141 : vector<8x8xf32>
    %cst_61 = arith.constant dense<0.000000e+00> : vector<8xf32>
    %143 = vector.multi_reduction <add>, %142, %cst_61 [1] : vector<8x8xf32> to vector<8xf32>
    %144 = vector.shape_cast %143 : vector<8xf32> to vector<8x1xf32>
    %145 = tpu.reciprocal %144 {approx = true} : vector<8x1xf32> -> vector<8x1xf32>
    %146 = vector.broadcast %145 : vector<8x1xf32> to vector<8x8xf32>
    %147 = arith.mulf %142, %146 : vector<8x8xf32>
    %cst_62 = arith.constant dense<0.000000e+00> : vector<8x8xf32>
    %148 = tpu.matmul %147, %133, %cst_62 {dimension_numbers = #tpu.dot_dimension_numbers<[1], [0], [0], [1], [0, 0, 1, 1], [], []>} : vector<8x8xf32>, vector<8x8xf32>, vector<8x8xf32> -> vector<8x8xf32>
    %c0_63 = arith.constant 0 : index
    %c0_64 = arith.constant 0 : index
    %149 = vector.load %arg3[%c0_63, %c0_64] : memref<32x32xf32, #tpu.memory_space<vmem>>, vector<8x32xf32>
    %cst_65 = arith.constant dense<0.000000e+00> : vector<8x32xf32>
    %150 = tpu.matmul %148, %149, %cst_65 {dimension_numbers = #tpu.dot_dimension_numbers<[1], [0], [0], [1], [0, 0, 1, 1], [], []>} : vector<8x8xf32>, vector<8x32xf32>, vector<8x32xf32> -> vector<8x32xf32>
    %151 = arith.addf %130, %150 : vector<8x32xf32>
    %152 = vector.extract_strided_slice %29 {offsets = [8, 8], sizes = [8, 8], strides = [1, 1]} : vector<16x96xf32> to vector<8x8xf32>
    %153 = vector.extract_strided_slice %29 {offsets = [8, 40], sizes = [8, 8], strides = [1, 1]} : vector<16x96xf32> to vector<8x8xf32>
    %154 = vector.extract_strided_slice %29 {offsets = [8, 72], sizes = [8, 8], strides = [1, 1]} : vector<16x96xf32> to vector<8x8xf32>
    %cst_66 = arith.constant dense<0.000000e+00> : vector<8x8xf32>
    %155 = tpu.matmul %152, %153, %cst_66 {dimension_numbers = #tpu.dot_dimension_numbers<[1], [1], [0], [0], [0, 0, 1, 0], [], []>} : vector<8x8xf32>, vector<8x8xf32>, vector<8x8xf32> -> vector<8x8xf32>
    %cst_67 = arith.constant 0.353553385 : f32
    %156 = vector.broadcast %cst_67 : f32 to vector<8x8xf32>
    %157 = arith.mulf %155, %156 : vector<8x8xf32>
    %158 = arith.addf %157, %129 : vector<8x8xf32>
    %cst_68 = arith.constant dense<0xFF800000> : vector<8xf32>
    %159 = vector.multi_reduction <maximumf>, %158, %cst_68 [1] : vector<8x8xf32> to vector<8xf32>
    %160 = vector.shape_cast %159 : vector<8xf32> to vector<8x1xf32>
    %161 = vector.broadcast %160 : vector<8x1xf32> to vector<8x8xf32>
    %162 = arith.subf %158, %161 : vector<8x8xf32>
    %163 = math.exp %162 : vector<8x8xf32>
    %cst_69 = arith.constant dense<0.000000e+00> : vector<8xf32>
    %164 = vector.multi_reduction <add>, %163, %cst_69 [1] : vector<8x8xf32> to vector<8xf32>
    %165 = vector.shape_cast %164 : vector<8xf32> to vector<8x1xf32>
    %166 = tpu.reciprocal %165 {approx = true} : vector<8x1xf32> -> vector<8x1xf32>
    %167 = vector.broadcast %166 : vector<8x1xf32> to vector<8x8xf32>
    %168 = arith.mulf %163, %167 : vector<8x8xf32>
    %cst_70 = arith.constant dense<0.000000e+00> : vector<8x8xf32>
    %169 = tpu.matmul %168, %154, %cst_70 {dimension_numbers = #tpu.dot_dimension_numbers<[1], [0], [0], [1], [0, 0, 1, 1], [], []>} : vector<8x8xf32>, vector<8x8xf32>, vector<8x8xf32> -> vector<8x8xf32>
    %c8_71 = arith.constant 8 : index
    %c0_72 = arith.constant 0 : index
    %170 = vector.load %arg3[%c8_71, %c0_72] : memref<32x32xf32, #tpu.memory_space<vmem>>, vector<8x32xf32>
    %cst_73 = arith.constant dense<0.000000e+00> : vector<8x32xf32>
    %171 = tpu.matmul %169, %170, %cst_73 {dimension_numbers = #tpu.dot_dimension_numbers<[1], [0], [0], [1], [0, 0, 1, 1], [], []>} : vector<8x8xf32>, vector<8x32xf32>, vector<8x32xf32> -> vector<8x32xf32>
    %172 = arith.addf %151, %171 : vector<8x32xf32>
    %173 = vector.extract_strided_slice %29 {offsets = [8, 16], sizes = [8, 8], strides = [1, 1]} : vector<16x96xf32> to vector<8x8xf32>
    %174 = vector.extract_strided_slice %29 {offsets = [8, 48], sizes = [8, 8], strides = [1, 1]} : vector<16x96xf32> to vector<8x8xf32>
    %175 = vector.extract_strided_slice %29 {offsets = [8, 80], sizes = [8, 8], strides = [1, 1]} : vector<16x96xf32> to vector<8x8xf32>
    %cst_74 = arith.constant dense<0.000000e+00> : vector<8x8xf32>
    %176 = tpu.matmul %173, %174, %cst_74 {dimension_numbers = #tpu.dot_dimension_numbers<[1], [1], [0], [0], [0, 0, 1, 0], [], []>} : vector<8x8xf32>, vector<8x8xf32>, vector<8x8xf32> -> vector<8x8xf32>
    %cst_75 = arith.constant 0.353553385 : f32
    %177 = vector.broadcast %cst_75 : f32 to vector<8x8xf32>
    %178 = arith.mulf %176, %177 : vector<8x8xf32>
    %179 = arith.addf %178, %129 : vector<8x8xf32>
    %cst_76 = arith.constant dense<0xFF800000> : vector<8xf32>
    %180 = vector.multi_reduction <maximumf>, %179, %cst_76 [1] : vector<8x8xf32> to vector<8xf32>
    %181 = vector.shape_cast %180 : vector<8xf32> to vector<8x1xf32>
    %182 = vector.broadcast %181 : vector<8x1xf32> to vector<8x8xf32>
    %183 = arith.subf %179, %182 : vector<8x8xf32>
    %184 = math.exp %183 : vector<8x8xf32>
    %cst_77 = arith.constant dense<0.000000e+00> : vector<8xf32>
    %185 = vector.multi_reduction <add>, %184, %cst_77 [1] : vector<8x8xf32> to vector<8xf32>
    %186 = vector.shape_cast %185 : vector<8xf32> to vector<8x1xf32>
    %187 = tpu.reciprocal %186 {approx = true} : vector<8x1xf32> -> vector<8x1xf32>
    %188 = vector.broadcast %187 : vector<8x1xf32> to vector<8x8xf32>
    %189 = arith.mulf %184, %188 : vector<8x8xf32>
    %cst_78 = arith.constant dense<0.000000e+00> : vector<8x8xf32>
    %190 = tpu.matmul %189, %175, %cst_78 {dimension_numbers = #tpu.dot_dimension_numbers<[1], [0], [0], [1], [0, 0, 1, 1], [], []>} : vector<8x8xf32>, vector<8x8xf32>, vector<8x8xf32> -> vector<8x8xf32>
    %c16_79 = arith.constant 16 : index
    %c0_80 = arith.constant 0 : index
    %191 = vector.load %arg3[%c16_79, %c0_80] : memref<32x32xf32, #tpu.memory_space<vmem>>, vector<8x32xf32>
    %cst_81 = arith.constant dense<0.000000e+00> : vector<8x32xf32>
    %192 = tpu.matmul %190, %191, %cst_81 {dimension_numbers = #tpu.dot_dimension_numbers<[1], [0], [0], [1], [0, 0, 1, 1], [], []>} : vector<8x8xf32>, vector<8x32xf32>, vector<8x32xf32> -> vector<8x32xf32>
    %193 = arith.addf %172, %192 : vector<8x32xf32>
    %194 = vector.extract_strided_slice %29 {offsets = [8, 24], sizes = [8, 8], strides = [1, 1]} : vector<16x96xf32> to vector<8x8xf32>
    %195 = vector.extract_strided_slice %29 {offsets = [8, 56], sizes = [8, 8], strides = [1, 1]} : vector<16x96xf32> to vector<8x8xf32>
    %196 = vector.extract_strided_slice %29 {offsets = [8, 88], sizes = [8, 8], strides = [1, 1]} : vector<16x96xf32> to vector<8x8xf32>
    %cst_82 = arith.constant dense<0.000000e+00> : vector<8x8xf32>
    %197 = tpu.matmul %194, %195, %cst_82 {dimension_numbers = #tpu.dot_dimension_numbers<[1], [1], [0], [0], [0, 0, 1, 0], [], []>} : vector<8x8xf32>, vector<8x8xf32>, vector<8x8xf32> -> vector<8x8xf32>
    %cst_83 = arith.constant 0.353553385 : f32
    %198 = vector.broadcast %cst_83 : f32 to vector<8x8xf32>
    %199 = arith.mulf %197, %198 : vector<8x8xf32>
    %200 = arith.addf %199, %129 : vector<8x8xf32>
    %cst_84 = arith.constant dense<0xFF800000> : vector<8xf32>
    %201 = vector.multi_reduction <maximumf>, %200, %cst_84 [1] : vector<8x8xf32> to vector<8xf32>
    %202 = vector.shape_cast %201 : vector<8xf32> to vector<8x1xf32>
    %203 = vector.broadcast %202 : vector<8x1xf32> to vector<8x8xf32>
    %204 = arith.subf %200, %203 : vector<8x8xf32>
    %205 = math.exp %204 : vector<8x8xf32>
    %cst_85 = arith.constant dense<0.000000e+00> : vector<8xf32>
    %206 = vector.multi_reduction <add>, %205, %cst_85 [1] : vector<8x8xf32> to vector<8xf32>
    %207 = vector.shape_cast %206 : vector<8xf32> to vector<8x1xf32>
    %208 = tpu.reciprocal %207 {approx = true} : vector<8x1xf32> -> vector<8x1xf32>
    %209 = vector.broadcast %208 : vector<8x1xf32> to vector<8x8xf32>
    %210 = arith.mulf %205, %209 : vector<8x8xf32>
    %cst_86 = arith.constant dense<0.000000e+00> : vector<8x8xf32>
    %211 = tpu.matmul %210, %196, %cst_86 {dimension_numbers = #tpu.dot_dimension_numbers<[1], [0], [0], [1], [0, 0, 1, 1], [], []>} : vector<8x8xf32>, vector<8x8xf32>, vector<8x8xf32> -> vector<8x8xf32>
    %c24_87 = arith.constant 24 : index
    %c0_88 = arith.constant 0 : index
    %212 = vector.load %arg3[%c24_87, %c0_88] : memref<32x32xf32, #tpu.memory_space<vmem>>, vector<8x32xf32>
    %cst_89 = arith.constant dense<0.000000e+00> : vector<8x32xf32>
    %213 = tpu.matmul %211, %212, %cst_89 {dimension_numbers = #tpu.dot_dimension_numbers<[1], [0], [0], [1], [0, 0, 1, 1], [], []>} : vector<8x8xf32>, vector<8x32xf32>, vector<8x32xf32> -> vector<8x32xf32>
    %214 = arith.addf %193, %213 : vector<8x32xf32>
    %c8_90 = arith.constant 8 : index
    %c0_91 = arith.constant 0 : index
    %215 = vector.load %arg8[%c8_90, %c0_91] : memref<16x32xf32, #tpu.memory_space<vmem>>, vector<8x32xf32>
    tpu.vector_store %arg8[%c8_90, %c0_91], %214 {strides = array<i32>} : memref<16x32xf32, #tpu.memory_space<vmem>>, vector<8x32xf32>,
    %c0_92 = arith.constant 0 : index
    %c0_93 = arith.constant 0 : index
    %216 = vector.load %arg8[%c0_92, %c0_93] : memref<16x32xf32, #tpu.memory_space<vmem>>, vector<16x32xf32>
    %cst_94 = arith.constant dense<0.000000e+00> : vector<16xf32>
    %217 = vector.multi_reduction <add>, %216, %cst_94 [1] : vector<16x32xf32> to vector<16xf32>
    %218 = vector.shape_cast %217 : vector<16xf32> to vector<16x1xf32>
    %cst_95 = arith.constant 3.200000e+01 : f32
    %219 = vector.broadcast %cst_95 : f32 to vector<16x1xf32>
    %220 = arith.divf %218, %219 : vector<16x1xf32>
    %221 = vector.broadcast %220 : vector<16x1xf32> to vector<16x32xf32>
    %222 = arith.subf %216, %221 : vector<16x32xf32>
    %223 = arith.mulf %222, %222 : vector<16x32xf32>
    %cst_96 = arith.constant dense<0.000000e+00> : vector<16xf32>
    %224 = vector.multi_reduction <add>, %223, %cst_96 [1] : vector<16x32xf32> to vector<16xf32>
    %225 = vector.shape_cast %224 : vector<16xf32> to vector<16x1xf32>
    %cst_97 = arith.constant 3.100000e+01 : f32
    %226 = vector.broadcast %cst_97 : f32 to vector<16x1xf32>
    %227 = arith.divf %225, %226 : vector<16x1xf32>
    %228 = math.sqrt %227 : vector<16x1xf32>
    %cst_98 = arith.constant 9.99999997E-7 : f32
    %229 = vector.broadcast %cst_98 : f32 to vector<16x1xf32>
    %230 = arith.addf %228, %229 : vector<16x1xf32>
    %231 = tpu.reciprocal %230 {approx = true} : vector<16x1xf32> -> vector<16x1xf32>
    %232 = vector.broadcast %3 : vector<1x32xf32> to vector<16x32xf32>
    %233 = arith.mulf %232, %222 : vector<16x32xf32>
    %234 = vector.broadcast %231 : vector<16x1xf32> to vector<16x32xf32>
    %235 = arith.mulf %233, %234 : vector<16x32xf32>
    %236 = vector.broadcast %4 : vector<1x32xf32> to vector<16x32xf32>
    %237 = arith.addf %235, %236 : vector<16x32xf32>
    %c0_99 = arith.constant 0 : index
    %c0_100 = arith.constant 0 : index
    %238 = vector.load %arg4[%c0_99, %c0_100] : memref<32x64xf32, #tpu.memory_space<vmem>>, vector<32x64xf32>
    %cst_101 = arith.constant dense<0.000000e+00> : vector<16x64xf32>
    %239 = tpu.matmul %237, %238, %cst_101 {dimension_numbers = #tpu.dot_dimension_numbers<[1], [0], [0], [1], [0, 0, 1, 1], [], []>} : vector<16x32xf32>, vector<32x64xf32>, vector<16x64xf32> -> vector<16x64xf32>
    %240 = vector.broadcast %6 : vector<1x64xf32> to vector<16x64xf32>
    %241 = arith.addf %239, %240 : vector<16x64xf32>
    %cst_102 = arith.constant 0.000000e+00 : f32
    %242 = vector.broadcast %cst_102 : f32 to vector<16x64xf32>
    %243 = arith.maximumf %241, %242 : vector<16x64xf32>
    %c0_103 = arith.constant 0 : index
    %c0_104 = arith.constant 0 : index
    %244 = vector.load %arg5[%c0_103, %c0_104] : memref<64x32xf32, #tpu.memory_space<vmem>>, vector<64x32xf32>
    %cst_105 = arith.constant dense<0.000000e+00> : vector<16x32xf32>
    %245 = tpu.matmul %243, %244, %cst_105 {dimension_numbers = #tpu.dot_dimension_numbers<[1], [0], [0], [1], [0, 0, 1, 1], [], []>} : vector<16x64xf32>, vector<64x32xf32>, vector<16x32xf32> -> vector<16x32xf32>
    %246 = vector.broadcast %5 : vector<1x32xf32> to vector<16x32xf32>
    %247 = arith.addf %245, %246 : vector<16x32xf32>
    %248 = arith.addf %216, %247 : vector<16x32xf32>
    %c0_106 = arith.constant 0 : index
    %c0_107 = arith.constant 0 : index
    %249 = vector.load %arg8[%c0_106, %c0_107] : memref<16x32xf32, #tpu.memory_space<vmem>>, vector<16x32xf32>
    tpu.vector_store %arg8[%c0_106, %c0_107], %248 {strides = array<i32>} : memref<16x32xf32, #tpu.memory_space<vmem>>, vector<16x32xf32>,
    return
  }
}

</mosaic_0001>

<llo_original>
// kernel: tpu_custom_call.1
$region0: #{tpu_custom_call.1}
  #allocation0 [shape = 'u32[]', space=smem, size = 0x4, offset = 0x4, fixed_abs, tag = 'smem constant byte address 0x4 - core index']
  #allocation1 [shape = 'u32[144,128]{1,0:T(1,128)}', space=vmem, size = 0x12000, scoped, tag = 'internal scratch']
  %s0 = inlined_call_operand.hbm [shape: f32[16,32], index: 0, kind: input, shape index: {}]
  %s1 = inlined_call_operand.hbm [shape: s32[2,8,8], index: 1, kind: input, shape index: {}]
  %s2 = inlined_call_operand.vmem [shape: f32[32,96], index: 2, kind: input, shape index: {}]
  %s3 = inlined_call_operand.vmem [shape: f32[32,32], index: 3, kind: input, shape index: {}]
  %s4 = inlined_call_operand.vmem [shape: f32[32,64], index: 4, kind: input, shape index: {}]
  %s5 = inlined_call_operand.vmem [shape: f32[64,32], index: 5, kind: input, shape index: {}]
  %s6 = inlined_call_operand.vmem [shape: f32[5,32], index: 6, kind: input, shape index: {}]
  %s7 = inlined_call_operand.vmem [shape: f32[1,64], index: 7, kind: input, shape index: {}]
  %s8 = inlined_call_operand.hbm [shape: f32[16,32], index: 8, kind: output, shape index: {}]
  %s9 = sld [smem:[#allocation0]]
  $region50: #{tpu_custom_call.1} parent=0
    _
  %s11 = ssub.s32 1, %s9
  %s12 = scalar_select 0, %s11, %s9
  $region1: #{tpu_custom_call.1} parent=0
    #allocation2 [shape = 'u8[8192]{0}', space=vmem, size = 0x2000, scoped, tag = 'input window, operand 0, single buffered']
    #allocation3 [shape = 's32[1]{0}', space=sflag, size = 0x4, scoped, tag = 'scoped memory for tpu_custom_call.1']
    #allocation4 [shape = 's32[1]{0}', space=sflag, size = 0x4, scoped, tag = 'scoped memory for tpu_custom_call.1']
    #allocation5 [shape = 'u8[8192]{0}', space=vmem, size = 0x2000, scoped, tag = 'input window, operand 1, single buffered']
    #allocation6 [shape = 's32[1]{0}', space=sflag, size = 0x4, scoped, tag = 'scoped memory for tpu_custom_call.1']
    #allocation7 [shape = 'u8[8192]{0}', space=vmem, size = 0x2000, scoped, tag = 'output window, operand 0, single buffered']
    %13 = vsyncpa [#allocation3], 0
    %14 = vsyncpa [#allocation6], 0
    %15 = vsyncpa [#allocation4], 0
    // Predicated region
    $region2: #{tpu_custom_call.1} parent=1 // pred_check
      _
    $region3: #{tpu_custom_call.1} parent=1 // pred_check_branch
      %17 = sbr.rel (0) target = $region5
    $region4: #{tpu_custom_call.1} parent=1 // pred_region
      %s19 = ssub.s32 256, 256
      %20 = vsyncadd [#allocation3], %s19
      %s21 = sshll.u32 [#allocation2], 4
      %s22 = int_to_ptr.vmem [resolvable:$true] %s21
      %27 = dma.hbm_to_vmem [thread:$0]  %s0, 256, %s22, [#allocation3], 128, 128, 8
    $region5: #{tpu_custom_call.1} parent=1 // pred_fallthru
      _
    // Predicated region
    $region6: #{tpu_custom_call.1} parent=1 // pred_check
      _
    $region7: #{tpu_custom_call.1} parent=1 // pred_check_branch
      %29 = sbr.rel (0) target = $region9
    $region8: #{tpu_custom_call.1} parent=1 // pred_region
      %s31 = ssub.s32 256, 256
      %32 = vsyncadd [#allocation6], %s31
      %s33 = sshll.u32 [#allocation5], 4
      %s34 = int_to_ptr.vmem [resolvable:$true] %s33
      %39 = dma.hbm_to_vmem [thread:$0]  %s1, 256, %s34, [#allocation6], 128, 128, 8
    $region9: #{tpu_custom_call.1} parent=1 // pred_fallthru
      _
    // Predicated region
    $region10: #{tpu_custom_call.1} parent=1 // pred_check
      _
    $region11: #{tpu_custom_call.1} parent=1 // pred_check_branch
      %41 = sbr.rel (0) target = $region13
    $region12: #{tpu_custom_call.1} parent=1 // pred_region
      _
    $region13: #{tpu_custom_call.1} parent=1 // pred_fallthru
      _
    // Predicated region
    $region14: #{tpu_custom_call.1} parent=1 // pred_check
      _
    $region15: #{tpu_custom_call.1} parent=1 // pred_check_branch
      %43 = sbr.rel (0) target = $region17
    $region16: #{tpu_custom_call.1} parent=1 // pred_region
      _
    $region17: #{tpu_custom_call.1} parent=1 // pred_fallthru
      _
    // Predicated region
    $region18: #{tpu_custom_call.1} parent=1 // pred_check
      _
    $region19: #{tpu_custom_call.1} parent=1 // pred_check_branch
      %45 = sbr.rel (0) target = $region21
    $region20: #{tpu_custom_call.1} parent=1 // pred_region
      _
    $region21: #{tpu_custom_call.1} parent=1 // pred_fallthru
      _
    // Predicated region
    $region22: #{tpu_custom_call.1} parent=1 // pred_check
      _
    $region23: #{tpu_custom_call.1} parent=1 // pred_check_branch
      %47 = sbr.rel (0) target = $region25
    $region24: #{tpu_custom_call.1} parent=1 // pred_region
      _
    $region25: #{tpu_custom_call.1} parent=1 // pred_fallthru
      _
    // Predicated region
    $region26: #{tpu_custom_call.1} parent=1 // pred_check
      _
    $region27: #{tpu_custom_call.1} parent=1 // pred_check_branch
      %49 = sbr.rel (0) target = $region29
    $region28: #{tpu_custom_call.1} parent=1 // pred_region
      _
    $region29: #{tpu_custom_call.1} parent=1 // pred_fallthru
      _
    // Predicated region
    $region30: #{tpu_custom_call.1} parent=1 // pred_check
      _
    $region31: #{tpu_custom_call.1} parent=1 // pred_check_branch
      %51 = sbr.rel (0) target = $region33
    $region32: #{tpu_custom_call.1} parent=1 // pred_region
      _
    $region33: #{tpu_custom_call.1} parent=1 // pred_fallthru
      _
    // Predicated region
    $region34: #{tpu_custom_call.1} parent=1 // pred_check
      _
    $region35: #{tpu_custom_call.1} parent=1 // pred_check_branch
      %53 = sbr.rel (0) target = $region37
    $region36: #{tpu_custom_call.1} parent=1 // pred_region
      %54 = dma.done [#allocation3], 256
    $region37: #{tpu_custom_call.1} parent=1 // pred_fallthru
      _
    // Predicated region
    $region38: #{tpu_custom_call.1} parent=1 // pred_check
      _
    $region39: #{tpu_custom_call.1} parent=1 // pred_check_branch
      %56 = sbr.rel (0) target = $region41
    $region40: #{tpu_custom_call.1} parent=1 // pred_region
      %57 = dma.done [#allocation6], 256
    $region41: #{tpu_custom_call.1} parent=1 // pred_fallthru
      _
    %v58 = vld [vmem:[#allocation2] sm:$0xff]
    %v59 = vld [vmem:[#allocation2 + $0x8] sm:$0xff]
    %v60 = vld [vmem:[%s6] sm:$0x1]
    %v61 = vld [vmem:[%s6 + $0x1] sm:$0x1]
    %v62 = vld [vmem:[%s6 + $0x2] sm:$0x1]
    %v63 = vld [vmem:[%s6 + $0x3] sm:$0x1]
    %v64 = vld [vmem:[%s6 + $0x4] sm:$0x1]
    %v65 = vld [vmem:[%s7] sm:$0x1]
    %vm66 = vcmask 261120
    %v67 = vsel %vm66, %v58, 0.0
    %68 = vadd.xlane.f32.xlu0 %v67
    %v69 = vpop.xlane.xlu0 %68
    %v70 = vsel %vm66, %v59, 0.0
    %71 = vadd.xlane.f32.xlu0 %v70
    %v72 = vpop.xlane.xlu0 %71
    %v73 = vrcp.pop 32.0
    %v74 = vmul.f32 %v69, %v73
    %v75 = vmul.f32 %v72, %v73
    %v76 = vsub.f32 %v58, %v74
    %v77 = vsub.f32 %v59, %v75
    %v78 = vmul.f32 %v76, %v76
    %v79 = vmul.f32 %v77, %v77
    %v80 = vsel %vm66, %v78, 0.0
    %81 = vadd.xlane.f32.xlu0 %v80
    %v82 = vpop.xlane.xlu0 %81
    %v83 = vsel %vm66, %v79, 0.0
    %84 = vadd.xlane.f32.xlu0 %v83
    %v85 = vpop.xlane.xlu0 %84
    %v86 = vrcp.pop 31.0
    %v87 = vmul.f32 %v82, %v86
    %v88 = vmul.f32 %v85, %v86
    %v89 = vrsqrt.pop %v87
    %v90 = vmul.f32 %v87, %v89
    %vm91 = vcmp.eq.f32.partialorder %v87, inf
    %v92 = vsel %vm91, %v87, %v90
    %vm93 = vcmp.eq.f32.partialorder %v87, 0.0
    %v94 = vand.u32 %v87, 2147483648
    %v95 = vsel %vm93, %v94, %v92
    %v96 = vrsqrt.pop %v88
    %v97 = vmul.f32 %v88, %v96
    %vm98 = vcmp.eq.f32.partialorder %v88, inf
    %v99 = vsel %vm98, %v88, %v97
    %vm100 = vcmp.eq.f32.partialorder %v88, 0.0
    %v101 = vand.u32 %v88, 2147483648
    %v102 = vsel %vm100, %v101, %v99
    %v103 = vadd.f32 %v95, 1e-06
    %v104 = vadd.f32 %v102, 1e-06
    %v105 = vrcp.pop %v103
    %v106 = vrcp.pop %v104
    %v107 = vlaneseq
    %v108 = vshrl.u32 %v107, 7
    %v109 = vsub.s32 0, %v108
    %v110 = vrot.slane %v60, %v109
    %v111 = vmul.f32 %v110, %v76
    %v112 = vmul.f32 %v110, %v77
    %v113 = vmul.f32 %v111, %v105
    %v114 = vmul.f32 %v112, %v106
    %v115 = vlaneseq
    %v116 = vshrl.u32 %v115, 7
    %v117 = vsub.s32 0, %v116
    %v118 = vrot.slane %v61, %v117
    %v119 = vadd.f32 %v113, %v118
    %v120 = vadd.f32 %v114, %v118
    %v121 = vld [vmem:[%s2] sm:$0xff]
    %v122 = vld [vmem:[%s2 + $0x8] sm:$0xff]
    %v123 = vld [vmem:[%s2 + $0x10] sm:$0xff]
    %v124 = vld [vmem:[%s2 + $0x18] sm:$0xff]
    %v126 = vsel %vm66, %v119, 0
    %v129 = vsel %vm66, %v120, 0
    %131 = vmatprep.subr.mxu0 0.0
    %132 = vmatpush1.msra.mxu0 %v121
    %133 = vmatprep.subr.mxu0 0.0
    %134 = vmatpush1.msra.mxu0 %v122
    %135 = vmatprep.subr.mxu0 0.0
    %136 = vmatpush1.msra.mxu0 %v123
    %137 = vmatprep.subr.mxu0 0.0
    %138 = vmatpush1.msra.mxu0 %v124
    %139 = vmatprep.subr.mxu0 0.0
    %140 = vmatpush1.msra.mxu0 0.0
    %141 = vmatprep.subr.mxu0 0.0
    %142 = vmatpush1.msra.mxu0 0.0
    %143 = vmatprep.subr.mxu0 0.0
    %144 = vmatpush1.msra.mxu0 0.0
    %145 = vmatprep.subr.mxu0 0.0
    %146 = vmatpush1.msra.mxu0 0.0
    %147 = vmatprep.subr.mxu0 0.0
    %148 = vmatpush1.msra.mxu0 0.0
    %149 = vmatprep.subr.mxu0 0.0
    %150 = vmatpush1.msra.mxu0 0.0
    %151 = vmatprep.subr.mxu0 0.0
    %152 = vmatpush1.msra.mxu0 0.0
    %153 = vmatprep.subr.mxu0 0.0
    %154 = vmatpush1.msra.mxu0 0.0
    %155 = vmatprep.subr.mxu0 0.0
    %156 = vmatpush1.msra.mxu0 0.0
    %157 = vmatprep.subr.mxu0 0.0
    %158 = vmatpush1.msra.mxu0 0.0
    %159 = vmatprep.subr.mxu0 0.0
    %160 = vmatpush1.msra.mxu0 0.0
    %161 = vmatprep.subr.mxu0 0.0
    %162 = vmatpush1.msra.mxu0 0.0
    %163 = vmatprep.subr.mxu0 0.0
    %164 = vmatpush1.msra.mxu0 0.0
    %165 = vmatprep.subr.mxu0 0.0
    %166 = vmatpush1.msra.mxu0 0.0
    %167 = vmatprep.subr.mxu0 0.0
    %168 = vmatpush1.msra.mxu0 0.0
    %169 = vmatprep.subr.mxu0 0.0
    %170 = vmatpush1.msra.mxu0 0.0
    %171 = vmatprep.subr.mxu0 0.0
    %172 = vmatpush1.msra.mxu0 0.0
    %173 = vmatprep.subr.mxu0 0.0
    %174 = vmatpush1.msra.mxu0 0.0
    %175 = vmatprep.subr.mxu0 0.0
    %176 = vmatpush1.msra.mxu0 0.0
    %177 = vmatprep.subr.mxu0 0.0
    %178 = vmatpush1.msra.mxu0 0.0
    %179 = vmatprep.subr.mxu0 0.0
    %180 = vmatpush1.msra.mxu0 0.0
    %181 = vmatprep.subr.mxu0 0.0
    %182 = vmatpush1.msra.mxu0 0.0
    %183 = vmatprep.subr.mxu0 0.0
    %184 = vmatpush1.msra.mxu0 0.0
    %185 = vmatprep.subr.mxu0 0.0
    %186 = vmatpush1.msra.mxu0 0.0
    %187 = vmatprep.subr.mxu0 0.0
    %188 = vmatpush1.msra.mxu0 0.0
    %189 = vmatprep.subr.mxu0 0.0
    %190 = vmatpush1.msra.mxu0 0.0
    %191 = vmatprep.subr.mxu0 0.0
    %192 = vmatpush1.msra.mxu0 0.0
    %193 = vmatprep.subr.mxu0 0.0
    %194 = vmatpush1.msra.mxu0 0.0
    %195 = vmatprep.mubr.f32.mxu0 0.0
    %196 = vmatmul.mubr.f32.gmra.mrb[0].mxu0 %v126
    %v197 = vpop.f32.mrb[0].mxu0
    %v198 = vadd.f32 0.0, %v197
    %v199 = vpop.f32.mrb[0].mxu0
    %200 = vmatprep.mubr.f32.mxu0 0.0
    %201 = vmatmul.mubr.f32.gmra.mrb[0].mxu0 %v129
    %v202 = vpop.f32.mrb[0].mxu0
    %v203 = vadd.f32 0.0, %v202
    %v204 = vpop.f32.mrb[0].mxu0
    %205 = vdwg.mxu0
    %v206 = vld [vmem:[#allocation5] sm:$0xff]
    %vm207 = vcmp.eq.s32.totalorder %v206, 0
    %v208 = vsel %vm207, -1e+09, 0.0
    %210 = vrot.lane.b32.xlu0 %v198, 96
    %v211 = vpop.permute.xlu0 %210
    %vm212 = vcmask 64512
    %v213 = vsel %vm212, %v198, 0
    %v215 = vsel %vm212, %v211, 0
    %217 = vmatprep.subr.mxu0 0.0
    %218 = vmatpush1.xpose.msra.mxu0 %v215
    %219 = vmatprep.subr.mxu0 0.0
    %220 = vmatpush1.xpose.msra.mxu0 0.0
    %221 = vmatprep.subr.mxu0 0.0
    %222 = vmatpush1.xpose.msra.mxu0 0.0
    %223 = vmatprep.subr.mxu0 0.0
    %224 = vmatpush1.xpose.msra.mxu0 0.0
    %225 = vmatprep.subr.mxu0 0.0
    %226 = vmatpush1.xpose.msra.mxu0 0.0
    %227 = vmatprep.subr.mxu0 0.0
    %228 = vmatpush1.xpose.msra.mxu0 0.0
    %229 = vmatprep.subr.mxu0 0.0
    %230 = vmatpush1.xpose.msra.mxu0 0.0
    %231 = vmatprep.subr.mxu0 0.0
    %232 = vmatpush1.xpose.msra.mxu0 0.0
    %233 = vmatprep.subr.mxu0 0.0
    %234 = vmatpush1.xpose.msra.mxu0 0.0
    %235 = vmatprep.subr.mxu0 0.0
    %236 = vmatpush1.xpose.msra.mxu0 0.0
    %237 = vmatprep.subr.mxu0 0.0
    %238 = vmatpush1.xpose.msra.mxu0 0.0
    %239 = vmatprep.subr.mxu0 0.0
    %240 = vmatpush1.xpose.msra.mxu0 0.0
    %241 = vmatprep.subr.mxu0 0.0
    %242 = vmatpush1.xpose.msra.mxu0 0.0
    %243 = vmatprep.subr.mxu0 0.0
    %244 = vmatpush1.xpose.msra.mxu0 0.0
    %245 = vmatprep.subr.mxu0 0.0
    %246 = vmatpush1.xpose.msra.mxu0 0.0
    %247 = vmatprep.subr.mxu0 0.0
    %248 = vmatpush1.xpose.msra.mxu0 0.0
    %249 = vmatprep.subr.mxu0 0.0
    %250 = vmatpush1.xpose.msra.mxu0 0.0
    %251 = vmatprep.subr.mxu0 0.0
    %252 = vmatpush1.xpose.msra.mxu0 0.0
    %253 = vmatprep.subr.mxu0 0.0
    %254 = vmatpush1.xpose.msra.mxu0 0.0
    %255 = vmatprep.subr.mxu0 0.0
    %256 = vmatpush1.xpose.msra.mxu0 0.0
    %257 = vmatprep.subr.mxu0 0.0
    %258 = vmatpush1.xpose.msra.mxu0 0.0
    %259 = vmatprep.subr.mxu0 0.0
    %260 = vmatpush1.xpose.msra.mxu0 0.0
    %261 = vmatprep.subr.mxu0 0.0
    %262 = vmatpush1.xpose.msra.mxu0 0.0
    %263 = vmatprep.subr.mxu0 0.0
    %264 = vmatpush1.xpose.msra.mxu0 0.0
    %265 = vmatprep.subr.mxu0 0.0
    %266 = vmatpush1.xpose.msra.mxu0 0.0
    %267 = vmatprep.subr.mxu0 0.0
    %268 = vmatpush1.xpose.msra.mxu0 0.0
    %269 = vmatprep.subr.mxu0 0.0
    %270 = vmatpush1.xpose.msra.mxu0 0.0
    %271 = vmatprep.subr.mxu0 0.0
    %272 = vmatpush1.xpose.msra.mxu0 0.0
    %273 = vmatprep.subr.mxu0 0.0
    %274 = vmatpush1.xpose.msra.mxu0 0.0
    %275 = vmatprep.subr.mxu0 0.0
    %276 = vmatpush1.xpose.msra.mxu0 0.0
    %277 = vmatprep.subr.mxu0 0.0
    %278 = vmatpush1.xpose.msra.mxu0 0.0
    %279 = vmatprep.subr.mxu0 0.0
    %280 = vmatpush1.xpose.msra.mxu0 0.0
    %281 = vmatprep.mubr.f32.mxu0 0.0
    %282 = vmatmul.mubr.f32.gmra.mrb[0].mxu0 %v213
    %v283 = vpop.f32.mrb[0].mxu0
    %v284 = vadd.f32 0.0, %v283
    %v285 = vpop.f32.mrb[0].mxu0
    %286 = vdwg.mxu0
    %v287 = vmul.f32 %v284, 0.35355338
    %v288 = vadd.f32 %v287, %v208
    %v289 = vsel %vm212, %v288, -inf
    %290 = vmax.xlane.f32.xlu0 %v289
    %v291 = vpop.xlane.xlu0 %290
    %v292 = vsub.f32 %v288, %v291
    %v293 = vmul.f32 %v292, 1.442695
    %v294 = vpow.pop %v293
    %v295 = vsel %vm212, %v294, 0.0
    %296 = vadd.xlane.f32.xlu0 %v295
    %v297 = vpop.xlane.xlu0 %296
    %v298 = vrcp.pop %v297
    %v299 = vmul.f32 %v294, %v298
    %300 = vrot.lane.b32.xlu0 %v198, 64
    %v301 = vpop.permute.xlu0 %300
    %v304 = vsel %vm212, %v299, 0
    %306 = vmatprep.subr.mxu0 0.0
    %307 = vmatpush1.msra.mxu0 %v301
    %308 = vmatprep.subr.mxu0 0.0
    %309 = vmatpush1.msra.mxu0 0.0
    %310 = vmatprep.subr.mxu0 0.0
    %311 = vmatpush1.msra.mxu0 0.0
    %312 = vmatprep.subr.mxu0 0.0
    %313 = vmatpush1.msra.mxu0 0.0
    %314 = vmatprep.subr.mxu0 0.0
    %315 = vmatpush1.msra.mxu0 0.0
    %316 = vmatprep.subr.mxu0 0.0
    %317 = vmatpush1.msra.mxu0 0.0
    %318 = vmatprep.subr.mxu0 0.0
    %319 = vmatpush1.msra.mxu0 0.0
    %320 = vmatprep.subr.mxu0 0.0
    %321 = vmatpush1.msra.mxu0 0.0
    %322 = vmatprep.subr.mxu0 0.0
    %323 = vmatpush1.msra.mxu0 0.0
    %324 = vmatprep.subr.mxu0 0.0
    %325 = vmatpush1.msra.mxu0 0.0
    %326 = vmatprep.subr.mxu0 0.0
    %327 = vmatpush1.msra.mxu0 0.0
    %328 = vmatprep.subr.mxu0 0.0
    %329 = vmatpush1.msra.mxu0 0.0
    %330 = vmatprep.subr.mxu0 0.0
    %331 = vmatpush1.msra.mxu0 0.0
    %332 = vmatprep.subr.mxu0 0.0
    %333 = vmatpush1.msra.mxu0 0.0
    %334 = vmatprep.subr.mxu0 0.0
    %335 = vmatpush1.msra.mxu0 0.0
    %336 = vmatprep.subr.mxu0 0.0
    %337 = vmatpush1.msra.mxu0 0.0
    %338 = vmatprep.subr.mxu0 0.0
    %339 = vmatpush1.msra.mxu0 0.0
    %340 = vmatprep.subr.mxu0 0.0
    %341 = vmatpush1.msra.mxu0 0.0
    %342 = vmatprep.subr.mxu0 0.0
    %343 = vmatpush1.msra.mxu0 0.0
    %344 = vmatprep.subr.mxu0 0.0
    %345 = vmatpush1.msra.mxu0 0.0
    %346 = vmatprep.subr.mxu0 0.0
    %347 = vmatpush1.msra.mxu0 0.0
    %348 = vmatprep.subr.mxu0 0.0
    %349 = vmatpush1.msra.mxu0 0.0
    %350 = vmatprep.subr.mxu0 0.0
    %351 = vmatpush1.msra.mxu0 0.0
    %352 = vmatprep.subr.mxu0 0.0
    %353 = vmatpush1.msra.mxu0 0.0
    %354 = vmatprep.subr.mxu0 0.0
    %355 = vmatpush1.msra.mxu0 0.0
    %356 = vmatprep.subr.mxu0 0.0
    %357 = vmatpush1.msra.mxu0 0.0
    %358 = vmatprep.subr.mxu0 0.0
    %359 = vmatpush1.msra.mxu0 0.0
    %360 = vmatprep.subr.mxu0 0.0
    %361 = vmatpush1.msra.mxu0 0.0
    %362 = vmatprep.subr.mxu0 0.0
    %363 = vmatpush1.msra.mxu0 0.0
    %364 = vmatprep.subr.mxu0 0.0
    %365 = vmatpush1.msra.mxu0 0.0
    %366 = vmatprep.subr.mxu0 0.0
    %367 = vmatpush1.msra.mxu0 0.0
    %368 = vmatprep.subr.mxu0 0.0
    %369 = vmatpush1.msra.mxu0 0.0
    %370 = vmatprep.mubr.f32.mxu0 0.0
    %371 = vmatmul.mubr.f32.gmra.mrb[0].mxu0 %v304
    %v372 = vpop.f32.mrb[0].mxu0
    %v373 = vadd.f32 0.0, %v372
    %v374 = vpop.f32.mrb[0].mxu0
    %375 = vdwg.mxu0
    %v376 = vld [vmem:[%s3] sm:$0xff]
    %v378 = vsel %vm212, %v373, 0
    %380 = vmatprep.subr.mxu0 0.0
    %381 = vmatpush1.msra.mxu0 %v376
    %382 = vmatprep.subr.mxu0 0.0
    %383 = vmatpush1.msra.mxu0 0.0
    %384 = vmatprep.subr.mxu0 0.0
    %385 = vmatpush1.msra.mxu0 0.0
    %386 = vmatprep.subr.mxu0 0.0
    %387 = vmatpush1.msra.mxu0 0.0
    %388 = vmatprep.subr.mxu0 0.0
    %389 = vmatpush1.msra.mxu0 0.0
    %390 = vmatprep.subr.mxu0 0.0
    %391 = vmatpush1.msra.mxu0 0.0
    %392 = vmatprep.subr.mxu0 0.0
    %393 = vmatpush1.msra.mxu0 0.0
    %394 = vmatprep.subr.mxu0 0.0
    %395 = vmatpush1.msra.mxu0 0.0
    %396 = vmatprep.subr.mxu0 0.0
    %397 = vmatpush1.msra.mxu0 0.0
    %398 = vmatprep.subr.mxu0 0.0
    %399 = vmatpush1.msra.mxu0 0.0
    %400 = vmatprep.subr.mxu0 0.0
    %401 = vmatpush1.msra.mxu0 0.0
    %402 = vmatprep.subr.mxu0 0.0
    %403 = vmatpush1.msra.mxu0 0.0
    %404 = vmatprep.subr.mxu0 0.0
    %405 = vmatpush1.msra.mxu0 0.0
    %406 = vmatprep.subr.mxu0 0.0
    %407 = vmatpush1.msra.mxu0 0.0
    %408 = vmatprep.subr.mxu0 0.0
    %409 = vmatpush1.msra.mxu0 0.0
    %410 = vmatprep.subr.mxu0 0.0
    %411 = vmatpush1.msra.mxu0 0.0
    %412 = vmatprep.subr.mxu0 0.0
    %413 = vmatpush1.msra.mxu0 0.0
    %414 = vmatprep.subr.mxu0 0.0
    %415 = vmatpush1.msra.mxu0 0.0
    %416 = vmatprep.subr.mxu0 0.0
    %417 = vmatpush1.msra.mxu0 0.0
    %418 = vmatprep.subr.mxu0 0.0
    %419 = vmatpush1.msra.mxu0 0.0
    %420 = vmatprep.subr.mxu0 0.0
    %421 = vmatpush1.msra.mxu0 0.0
    %422 = vmatprep.subr.mxu0 0.0
    %423 = vmatpush1.msra.mxu0 0.0
    %424 = vmatprep.subr.mxu0 0.0
    %425 = vmatpush1.msra.mxu0 0.0
    %426 = vmatprep.subr.mxu0 0.0
    %427 = vmatpush1.msra.mxu0 0.0
    %428 = vmatprep.subr.mxu0 0.0
    %429 = vmatpush1.msra.mxu0 0.0
    %430 = vmatprep.subr.mxu0 0.0
    %431 = vmatpush1.msra.mxu0 0.0
    %432 = vmatprep.subr.mxu0 0.0
    %433 = vmatpush1.msra.mxu0 0.0
    %434 = vmatprep.subr.mxu0 0.0
    %435 = vmatpush1.msra.mxu0 0.0
    %436 = vmatprep.subr.mxu0 0.0
    %437 = vmatpush1.msra.mxu0 0.0
    %438 = vmatprep.subr.mxu0 0.0
    %439 = vmatpush1.msra.mxu0 0.0
    %440 = vmatprep.subr.mxu0 0.0
    %441 = vmatpush1.msra.mxu0 0.0
    %442 = vmatprep.subr.mxu0 0.0
    %443 = vmatpush1.msra.mxu0 0.0
    %444 = vmatprep.mubr.f32.mxu0 0.0
    %445 = vmatmul.mubr.f32.gmra.mrb[0].mxu0 %v378
    %v446 = vpop.f32.mrb[0].mxu0
    %v447 = vadd.f32 0.0, %v446
    %v448 = vpop.f32.mrb[0].mxu0
    %449 = vdwg.mxu0
    %v450 = vadd.f32 %v58, %v447
    %451 = vrot.lane.b32.xlu0 %v198, 120
    %v452 = vpop.permute.xlu0 %451
    %453 = vrot.lane.b32.xlu0 %v198, 88
    %v454 = vpop.permute.xlu0 %453
    %v455 = vsel %vm212, %v452, 0
    %v457 = vsel %vm212, %v454, 0
    %459 = vmatprep.subr.mxu0 0.0
    %460 = vmatpush1.xpose.msra.mxu0 %v457
    %461 = vmatprep.subr.mxu0 0.0
    %462 = vmatpush1.xpose.msra.mxu0 0.0
    %463 = vmatprep.subr.mxu0 0.0
    %464 = vmatpush1.xpose.msra.mxu0 0.0
    %465 = vmatprep.subr.mxu0 0.0
    %466 = vmatpush1.xpose.msra.mxu0 0.0
    %467 = vmatprep.subr.mxu0 0.0
    %468 = vmatpush1.xpose.msra.mxu0 0.0
    %469 = vmatprep.subr.mxu0 0.0
    %470 = vmatpush1.xpose.msra.mxu0 0.0
    %471 = vmatprep.subr.mxu0 0.0
    %472 = vmatpush1.xpose.msra.mxu0 0.0
    %473 = vmatprep.subr.mxu0 0.0
    %474 = vmatpush1.xpose.msra.mxu0 0.0
    %475 = vmatprep.subr.mxu0 0.0
    %476 = vmatpush1.xpose.msra.mxu0 0.0
    %477 = vmatprep.subr.mxu0 0.0
    %478 = vmatpush1.xpose.msra.mxu0 0.0
    %479 = vmatprep.subr.mxu0 0.0
    %480 = vmatpush1.xpose.msra.mxu0 0.0
    %481 = vmatprep.subr.mxu0 0.0
    %482 = vmatpush1.xpose.msra.mxu0 0.0
    %483 = vmatprep.subr.mxu0 0.0
    %484 = vmatpush1.xpose.msra.mxu0 0.0
    %485 = vmatprep.subr.mxu0 0.0
    %486 = vmatpush1.xpose.msra.mxu0 0.0
    %487 = vmatprep.subr.mxu0 0.0
    %488 = vmatpush1.xpose.msra.mxu0 0.0
    %489 = vmatprep.subr.mxu0 0.0
    %490 = vmatpush1.xpose.msra.mxu0 0.0
    %491 = vmatprep.subr.mxu0 0.0
    %492 = vmatpush1.xpose.msra.mxu0 0.0
    %493 = vmatprep.subr.mxu0 0.0
    %494 = vmatpush1.xpose.msra.mxu0 0.0
    %495 = vmatprep.subr.mxu0 0.0
    %496 = vmatpush1.xpose.msra.mxu0 0.0
    %497 = vmatprep.subr.mxu0 0.0
    %498 = vmatpush1.xpose.msra.mxu0 0.0
    %499 = vmatprep.subr.mxu0 0.0
    %500 = vmatpush1.xpose.msra.mxu0 0.0
    %501 = vmatprep.subr.mxu0 0.0
    %502 = vmatpush1.xpose.msra.mxu0 0.0
    %503 = vmatprep.subr.mxu0 0.0
    %504 = vmatpush1.xpose.msra.mxu0 0.0
    %505 = vmatprep.subr.mxu0 0.0
    %506 = vmatpush1.xpose.msra.mxu0 0.0
    %507 = vmatprep.subr.mxu0 0.0
    %508 = vmatpush1.xpose.msra.mxu0 0.0
    %509 = vmatprep.subr.mxu0 0.0
    %510 = vmatpush1.xpose.msra.mxu0 0.0
    %511 = vmatprep.subr.mxu0 0.0
    %512 = vmatpush1.xpose.msra.mxu0 0.0
    %513 = vmatprep.subr.mxu0 0.0
    %514 = vmatpush1.xpose.msra.mxu0 0.0
    %515 = vmatprep.subr.mxu0 0.0
    %516 = vmatpush1.xpose.msra.mxu0 0.0
    %517 = vmatprep.subr.mxu0 0.0
    %518 = vmatpush1.xpose.msra.mxu0 0.0
    %519 = vmatprep.subr.mxu0 0.0
    %520 = vmatpush1.xpose.msra.mxu0 0.0
    %521 = vmatprep.subr.mxu0 0.0
    %522 = vmatpush1.xpose.msra.mxu0 0.0
    %523 = vmatprep.mubr.f32.mxu0 0.0
    %524 = vmatmul.mubr.f32.gmra.mrb[0].mxu0 %v455
    %v525 = vpop.f32.mrb[0].mxu0
    %v526 = vadd.f32 0.0, %v525
    %v527 = vpop.f32.mrb[0].mxu0
    %528 = vdwg.mxu0
    %v529 = vmul.f32 %v526, 0.35355338
    %v530 = vadd.f32 %v529, %v208
    %v531 = vsel %vm212, %v530, -inf
    %532 = vmax.xlane.f32.xlu0 %v531
    %v533 = vpop.xlane.xlu0 %532
    %v534 = vsub.f32 %v530, %v533
    %v535 = vmul.f32 %v534, 1.442695
    %v536 = vpow.pop %v535
    %v537 = vsel %vm212, %v536, 0.0
    %538 = vadd.xlane.f32.xlu0 %v537
    %v539 = vpop.xlane.xlu0 %538
    %v540 = vrcp.pop %v539
    %v541 = vmul.f32 %v536, %v540
    %542 = vrot.lane.b32.xlu0 %v198, 56
    %v543 = vpop.permute.xlu0 %542
    %v546 = vsel %vm212, %v541, 0
    %548 = vmatprep.subr.mxu0 0.0
    %549 = vmatpush1.msra.mxu0 %v543
    %550 = vmatprep.subr.mxu0 0.0
    %551 = vmatpush1.msra.mxu0 0.0
    %552 = vmatprep.subr.mxu0 0.0
    %553 = vmatpush1.msra.mxu0 0.0
    %554 = vmatprep.subr.mxu0 0.0
    %555 = vmatpush1.msra.mxu0 0.0
    %556 = vmatprep.subr.mxu0 0.0
    %557 = vmatpush1.msra.mxu0 0.0
    %558 = vmatprep.subr.mxu0 0.0
    %559 = vmatpush1.msra.mxu0 0.0
    %560 = vmatprep.subr.mxu0 0.0
    %561 = vmatpush1.msra.mxu0 0.0
    %562 = vmatprep.subr.mxu0 0.0
    %563 = vmatpush1.msra.mxu0 0.0
    %564 = vmatprep.subr.mxu0 0.0
    %565 = vmatpush1.msra.mxu0 0.0
    %566 = vmatprep.subr.mxu0 0.0
    %567 = vmatpush1.msra.mxu0 0.0
    %568 = vmatprep.subr.mxu0 0.0
    %569 = vmatpush1.msra.mxu0 0.0
    %570 = vmatprep.subr.mxu0 0.0
    %571 = vmatpush1.msra.mxu0 0.0
    %572 = vmatprep.subr.mxu0 0.0
    %573 = vmatpush1.msra.mxu0 0.0
    %574 = vmatprep.subr.mxu0 0.0
    %575 = vmatpush1.msra.mxu0 0.0
    %576 = vmatprep.subr.mxu0 0.0
    %577 = vmatpush1.msra.mxu0 0.0
    %578 = vmatprep.subr.mxu0 0.0
    %579 = vmatpush1.msra.mxu0 0.0
    %580 = vmatprep.subr.mxu0 0.0
    %581 = vmatpush1.msra.mxu0 0.0
    %582 = vmatprep.subr.mxu0 0.0
    %583 = vmatpush1.msra.mxu0 0.0
    %584 = vmatprep.subr.mxu0 0.0
    %585 = vmatpush1.msra.mxu0 0.0
    %586 = vmatprep.subr.mxu0 0.0
    %587 = vmatpush1.msra.mxu0 0.0
    %588 = vmatprep.subr.mxu0 0.0
    %589 = vmatpush1.msra.mxu0 0.0
    %590 = vmatprep.subr.mxu0 0.0
    %591 = vmatpush1.msra.mxu0 0.0
    %592 = vmatprep.subr.mxu0 0.0
    %593 = vmatpush1.msra.mxu0 0.0
    %594 = vmatprep.subr.mxu0 0.0
    %595 = vmatpush1.msra.mxu0 0.0
    %596 = vmatprep.subr.mxu0 0.0
    %597 = vmatpush1.msra.mxu0 0.0
    %598 = vmatprep.subr.mxu0 0.0
    %599 = vmatpush1.msra.mxu0 0.0
    %600 = vmatprep.subr.mxu0 0.0
    %601 = vmatpush1.msra.mxu0 0.0
    %602 = vmatprep.subr.mxu0 0.0
    %603 = vmatpush1.msra.mxu0 0.0
    %604 = vmatprep.subr.mxu0 0.0
    %605 = vmatpush1.msra.mxu0 0.0
    %606 = vmatprep.subr.mxu0 0.0
    %607 = vmatpush1.msra.mxu0 0.0
    %608 = vmatprep.subr.mxu0 0.0
    %609 = vmatpush1.msra.mxu0 0.0
    %610 = vmatprep.subr.mxu0 0.0
    %611 = vmatpush1.msra.mxu0 0.0
    %612 = vmatprep.mubr.f32.mxu0 0.0
    %613 = vmatmul.mubr.f32.gmra.mrb[0].mxu0 %v546
    %v614 = vpop.f32.mrb[0].mxu0
    %v615 = vadd.f32 0.0, %v614
    %v616 = vpop.f32.mrb[0].mxu0
    %617 = vdwg.mxu0
    %v618 = vld [vmem:[%s3 + $0x8] sm:$0xff]
    %v620 = vsel %vm212, %v615, 0
    %622 = vmatprep.subr.mxu0 0.0
    %623 = vmatpush1.msra.mxu0 %v618
    %624 = vmatprep.subr.mxu0 0.0
    %625 = vmatpush1.msra.mxu0 0.0
    %626 = vmatprep.subr.mxu0 0.0
    %627 = vmatpush1.msra.mxu0 0.0
    %628 = vmatprep.subr.mxu0 0.0
    %629 = vmatpush1.msra.mxu0 0.0
    %630 = vmatprep.subr.mxu0 0.0
    %631 = vmatpush1.msra.mxu0 0.0
    %632 = vmatprep.subr.mxu0 0.0
    %633 = vmatpush1.msra.mxu0 0.0
    %634 = vmatprep.subr.mxu0 0.0
    %635 = vmatpush1.msra.mxu0 0.0
    %636 = vmatprep.subr.mxu0 0.0
    %637 = vmatpush1.msra.mxu0 0.0
    %638 = vmatprep.subr.mxu0 0.0
    %639 = vmatpush1.msra.mxu0 0.0
    %640 = vmatprep.subr.mxu0 0.0
    %641 = vmatpush1.msra.mxu0 0.0
    %642 = vmatprep.subr.mxu0 0.0
    %643 = vmatpush1.msra.mxu0 0.0
    %644 = vmatprep.subr.mxu0 0.0
    %645 = vmatpush1.msra.mxu0 0.0
    %646 = vmatprep.subr.mxu0 0.0
    %647 = vmatpush1.msra.mxu0 0.0
    %648 = vmatprep.subr.mxu0 0.0
    %649 = vmatpush1.msra.mxu0 0.0
    %650 = vmatprep.subr.mxu0 0.0
    %651 = vmatpush1.msra.mxu0 0.0
    %652 = vmatprep.subr.mxu0 0.0
    %653 = vmatpush1.msra.mxu0 0.0
    %654 = vmatprep.subr.mxu0 0.0
    %655 = vmatpush1.msra.mxu0 0.0
    %656 = vmatprep.subr.mxu0 0.0
    %657 = vmatpush1.msra.mxu0 0.0
    %658 = vmatprep.subr.mxu0 0.0
    %659 = vmatpush1.msra.mxu0 0.0
    %660 = vmatprep.subr.mxu0 0.0
    %661 = vmatpush1.msra.mxu0 0.0
    %662 = vmatprep.subr.mxu0 0.0
    %663 = vmatpush1.msra.mxu0 0.0
    %664 = vmatprep.subr.mxu0 0.0
    %665 = vmatpush1.msra.mxu0 0.0
    %666 = vmatprep.subr.mxu0 0.0
    %667 = vmatpush1.msra.mxu0 0.0
    %668 = vmatprep.subr.mxu0 0.0
    %669 = vmatpush1.msra.mxu0 0.0
    %670 = vmatprep.subr.mxu0 0.0
    %671 = vmatpush1.msra.mxu0 0.0
    %672 = vmatprep.subr.mxu0 0.0
    %673 = vmatpush1.msra.mxu0 0.0
    %674 = vmatprep.subr.mxu0 0.0
    %675 = vmatpush1.msra.mxu0 0.0
    %676 = vmatprep.subr.mxu0 0.0
    %677 = vmatpush1.msra.mxu0 0.0
    %678 = vmatprep.subr.mxu0 0.0
    %679 = vmatpush1.msra.mxu0 0.0
    %680 = vmatprep.subr.mxu0 0.0
    %681 = vmatpush1.msra.mxu0 0.0
    %682 = vmatprep.subr.mxu0 0.0
    %683 = vmatpush1.msra.mxu0 0.0
    %684 = vmatprep.subr.mxu0 0.0
    %685 = vmatpush1.msra.mxu0 0.0
    %686 = vmatprep.mubr.f32.mxu0 0.0
    %687 = vmatmul.mubr.f32.gmra.mrb[0].mxu0 %v620
    %v688 = vpop.f32.mrb[0].mxu0
    %v689 = vadd.f32 0.0, %v688
    %v690 = vpop.f32.mrb[0].mxu0
    %691 = vdwg.mxu0
    %v692 = vadd.f32 %v450, %v689
    %693 = vrot.lane.b32.xlu0 %v198, 112
    %v694 = vpop.permute.xlu0 %693
    %695 = vrot.lane.b32.xlu0 %v198, 80
    %v696 = vpop.permute.xlu0 %695
    %v697 = vsel %vm212, %v694, 0
    %v699 = vsel %vm212, %v696, 0
    %701 = vmatprep.subr.mxu0 0.0
    %702 = vmatpush1.xpose.msra.mxu0 %v699
    %703 = vmatprep.subr.mxu0 0.0
    %704 = vmatpush1.xpose.msra.mxu0 0.0
    %705 = vmatprep.subr.mxu0 0.0
    %706 = vmatpush1.xpose.msra.mxu0 0.0
    %707 = vmatprep.subr.mxu0 0.0
    %708 = vmatpush1.xpose.msra.mxu0 0.0
    %709 = vmatprep.subr.mxu0 0.0
    %710 = vmatpush1.xpose.msra.mxu0 0.0
    %711 = vmatprep.subr.mxu0 0.0
    %712 = vmatpush1.xpose.msra.mxu0 0.0
    %713 = vmatprep.subr.mxu0 0.0
    %714 = vmatpush1.xpose.msra.mxu0 0.0
    %715 = vmatprep.subr.mxu0 0.0
    %716 = vmatpush1.xpose.msra.mxu0 0.0
    %717 = vmatprep.subr.mxu0 0.0
    %718 = vmatpush1.xpose.msra.mxu0 0.0
    %719 = vmatprep.subr.mxu0 0.0
    %720 = vmatpush1.xpose.msra.mxu0 0.0
    %721 = vmatprep.subr.mxu0 0.0
    %722 = vmatpush1.xpose.msra.mxu0 0.0
    %723 = vmatprep.subr.mxu0 0.0
    %724 = vmatpush1.xpose.msra.mxu0 0.0
    %725 = vmatprep.subr.mxu0 0.0
    %726 = vmatpush1.xpose.msra.mxu0 0.0
    %727 = vmatprep.subr.mxu0 0.0
    %728 = vmatpush1.xpose.msra.mxu0 0.0
    %729 = vmatprep.subr.mxu0 0.0
    %730 = vmatpush1.xpose.msra.mxu0 0.0
    %731 = vmatprep.subr.mxu0 0.0
    %732 = vmatpush1.xpose.msra.mxu0 0.0
    %733 = vmatprep.subr.mxu0 0.0
    %734 = vmatpush1.xpose.msra.mxu0 0.0
    %735 = vmatprep.subr.mxu0 0.0
    %736 = vmatpush1.xpose.msra.mxu0 0.0
    %737 = vmatprep.subr.mxu0 0.0
    %738 = vmatpush1.xpose.msra.mxu0 0.0
    %739 = vmatprep.subr.mxu0 0.0
    %740 = vmatpush1.xpose.msra.mxu0 0.0
    %741 = vmatprep.subr.mxu0 0.0
    %742 = vmatpush1.xpose.msra.mxu0 0.0
    %743 = vmatprep.subr.mxu0 0.0
    %744 = vmatpush1.xpose.msra.mxu0 0.0
    %745 = vmatprep.subr.mxu0 0.0
    %746 = vmatpush1.xpose.msra.mxu0 0.0
    %747 = vmatprep.subr.mxu0 0.0
    %748 = vmatpush1.xpose.msra.mxu0 0.0
    %749 = vmatprep.subr.mxu0 0.0
    %750 = vmatpush1.xpose.msra.mxu0 0.0
    %751 = vmatprep.subr.mxu0 0.0
    %752 = vmatpush1.xpose.msra.mxu0 0.0
    %753 = vmatprep.subr.mxu0 0.0
    %754 = vmatpush1.xpose.msra.mxu0 0.0
    %755 = vmatprep.subr.mxu0 0.0
    %756 = vmatpush1.xpose.msra.mxu0 0.0
    %757 = vmatprep.subr.mxu0 0.0
    %758 = vmatpush1.xpose.msra.mxu0 0.0
    %759 = vmatprep.subr.mxu0 0.0
    %760 = vmatpush1.xpose.msra.mxu0 0.0
    %761 = vmatprep.subr.mxu0 0.0
    %762 = vmatpush1.xpose.msra.mxu0 0.0
    %763 = vmatprep.subr.mxu0 0.0
    %764 = vmatpush1.xpose.msra.mxu0 0.0
    %765 = vmatprep.mubr.f32.mxu0 0.0
    %766 = vmatmul.mubr.f32.gmra.mrb[0].mxu0 %v697
    %v767 = vpop.f32.mrb[0].mxu0
    %v768 = vadd.f32 0.0, %v767
    %v769 = vpop.f32.mrb[0].mxu0
    %770 = vdwg.mxu0
    %v771 = vmul.f32 %v768, 0.35355338
    %v772 = vadd.f32 %v771, %v208
    %v773 = vsel %vm212, %v772, -inf
    %774 = vmax.xlane.f32.xlu0 %v773
    %v775 = vpop.xlane.xlu0 %774
    %v776 = vsub.f32 %v772, %v775
    %v777 = vmul.f32 %v776, 1.442695
    %v778 = vpow.pop %v777
    %v779 = vsel %vm212, %v778, 0.0
    %780 = vadd.xlane.f32.xlu0 %v779
    %v781 = vpop.xlane.xlu0 %780
    %v782 = vrcp.pop %v781
    %v783 = vmul.f32 %v778, %v782
    %784 = vrot.lane.b32.xlu0 %v198, 48
    %v785 = vpop.permute.xlu0 %784
    %v788 = vsel %vm212, %v783, 0
    %790 = vmatprep.subr.mxu0 0.0
    %791 = vmatpush1.msra.mxu0 %v785
    %792 = vmatprep.subr.mxu0 0.0
    %793 = vmatpush1.msra.mxu0 0.0
    %794 = vmatprep.subr.mxu0 0.0
    %795 = vmatpush1.msra.mxu0 0.0
    %796 = vmatprep.subr.mxu0 0.0
    %797 = vmatpush1.msra.mxu0 0.0
    %798 = vmatprep.subr.mxu0 0.0
    %799 = vmatpush1.msra.mxu0 0.0
    %800 = vmatprep.subr.mxu0 0.0
    %801 = vmatpush1.msra.mxu0 0.0
    %802 = vmatprep.subr.mxu0 0.0
    %803 = vmatpush1.msra.mxu0 0.0
    %804 = vmatprep.subr.mxu0 0.0
    %805 = vmatpush1.msra.mxu0 0.0
    %806 = vmatprep.subr.mxu0 0.0
    %807 = vmatpush1.msra.mxu0 0.0
    %808 = vmatprep.subr.mxu0 0.0
    %809 = vmatpush1.msra.mxu0 0.0
    %810 = vmatprep.subr.mxu0 0.0
    %811 = vmatpush1.msra.mxu0 0.0
    %812 = vmatprep.subr.mxu0 0.0
    %813 = vmatpush1.msra.mxu0 0.0
    %814 = vmatprep.subr.mxu0 0.0
    %815 = vmatpush1.msra.mxu0 0.0
    %816 = vmatprep.subr.mxu0 0.0
    %817 = vmatpush1.msra.mxu0 0.0
    %818 = vmatprep.subr.mxu0 0.0
    %819 = vmatpush1.msra.mxu0 0.0
    %820 = vmatprep.subr.mxu0 0.0
    %821 = vmatpush1.msra.mxu0 0.0
    %822 = vmatprep.subr.mxu0 0.0
    %823 = vmatpush1.msra.mxu0 0.0
    %824 = vmatprep.subr.mxu0 0.0
    %825 = vmatpush1.msra.mxu0 0.0
    %826 = vmatprep.subr.mxu0 0.0
    %827 = vmatpush1.msra.mxu0 0.0
    %828 = vmatprep.subr.mxu0 0.0
    %829 = vmatpush1.msra.mxu0 0.0
    %830 = vmatprep.subr.mxu0 0.0
    %831 = vmatpush1.msra.mxu0 0.0
    %832 = vmatprep.subr.mxu0 0.0
    %833 = vmatpush1.msra.mxu0 0.0
    %834 = vmatprep.subr.mxu0 0.0
    %835 = vmatpush1.msra.mxu0 0.0
    %836 = vmatprep.subr.mxu0 0.0
    %837 = vmatpush1.msra.mxu0 0.0
    %838 = vmatprep.subr.mxu0 0.0
    %839 = vmatpush1.msra.mxu0 0.0
    %840 = vmatprep.subr.mxu0 0.0
    %841 = vmatpush1.msra.mxu0 0.0
    %842 = vmatprep.subr.mxu0 0.0
    %843 = vmatpush1.msra.mxu0 0.0
    %844 = vmatprep.subr.mxu0 0.0
    %845 = vmatpush1.msra.mxu0 0.0
    %846 = vmatprep.subr.mxu0 0.0
    %847 = vmatpush1.msra.mxu0 0.0
    %848 = vmatprep.subr.mxu0 0.0
    %849 = vmatpush1.msra.mxu0 0.0
    %850 = vmatprep.subr.mxu0 0.0
    %851 = vmatpush1.msra.mxu0 0.0
    %852 = vmatprep.subr.mxu0 0.0
    %853 = vmatpush1.msra.mxu0 0.0
    %854 = vmatprep.mubr.f32.mxu0 0.0
    %855 = vmatmul.mubr.f32.gmra.mrb[0].mxu0 %v788
    %v856 = vpop.f32.mrb[0].mxu0
    %v857 = vadd.f32 0.0, %v856
    %v858 = vpop.f32.mrb[0].mxu0
    %859 = vdwg.mxu0
    %v860 = vld [vmem:[%s3 + $0x10] sm:$0xff]
    %v862 = vsel %vm212, %v857, 0
    %864 = vmatprep.subr.mxu0 0.0
    %865 = vmatpush1.msra.mxu0 %v860
    %866 = vmatprep.subr.mxu0 0.0
    %867 = vmatpush1.msra.mxu0 0.0
    %868 = vmatprep.subr.mxu0 0.0
    %869 = vmatpush1.msra.mxu0 0.0
    %870 = vmatprep.subr.mxu0 0.0
    %871 = vmatpush1.msra.mxu0 0.0
    %872 = vmatprep.subr.mxu0 0.0
    %873 = vmatpush1.msra.mxu0 0.0
    %874 = vmatprep.subr.mxu0 0.0
    %875 = vmatpush1.msra.mxu0 0.0
    %876 = vmatprep.subr.mxu0 0.0
    %877 = vmatpush1.msra.mxu0 0.0
    %878 = vmatprep.subr.mxu0 0.0
    %879 = vmatpush1.msra.mxu0 0.0
    %880 = vmatprep.subr.mxu0 0.0
    %881 = vmatpush1.msra.mxu0 0.0
    %882 = vmatprep.subr.mxu0 0.0
    %883 = vmatpush1.msra.mxu0 0.0
    %884 = vmatprep.subr.mxu0 0.0
    %885 = vmatpush1.msra.mxu0 0.0
    %886 = vmatprep.subr.mxu0 0.0
    %887 = vmatpush1.msra.mxu0 0.0
    %888 = vmatprep.subr.mxu0 0.0
    %889 = vmatpush1.msra.mxu0 0.0
    %890 = vmatprep.subr.mxu0 0.0
    %891 = vmatpush1.msra.mxu0 0.0
    %892 = vmatprep.subr.mxu0 0.0
    %893 = vmatpush1.msra.mxu0 0.0
    %894 = vmatprep.subr.mxu0 0.0
    %895 = vmatpush1.msra.mxu0 0.0
    %896 = vmatprep.subr.mxu0 0.0
    %897 = vmatpush1.msra.mxu0 0.0
    %898 = vmatprep.subr.mxu0 0.0
    %899 = vmatpush1.msra.mxu0 0.0
    %900 = vmatprep.subr.mxu0 0.0
    %901 = vmatpush1.msra.mxu0 0.0
    %902 = vmatprep.subr.mxu0 0.0
    %903 = vmatpush1.msra.mxu0 0.0
    %904 = vmatprep.subr.mxu0 0.0
    %905 = vmatpush1.msra.mxu0 0.0
    %906 = vmatprep.subr.mxu0 0.0
    %907 = vmatpush1.msra.mxu0 0.0
    %908 = vmatprep.subr.mxu0 0.0
    %909 = vmatpush1.msra.mxu0 0.0
    %910 = vmatprep.subr.mxu0 0.0
    %911 = vmatpush1.msra.mxu0 0.0
    %912 = vmatprep.subr.mxu0 0.0
    %913 = vmatpush1.msra.mxu0 0.0
    %914 = vmatprep.subr.mxu0 0.0
    %915 = vmatpush1.msra.mxu0 0.0
    %916 = vmatprep.subr.mxu0 0.0
    %917 = vmatpush1.msra.mxu0 0.0
    %918 = vmatprep.subr.mxu0 0.0
    %919 = vmatpush1.msra.mxu0 0.0
    %920 = vmatprep.subr.mxu0 0.0
    %921 = vmatpush1.msra.mxu0 0.0
    %922 = vmatprep.subr.mxu0 0.0
    %923 = vmatpush1.msra.mxu0 0.0
    %924 = vmatprep.subr.mxu0 0.0
    %925 = vmatpush1.msra.mxu0 0.0
    %926 = vmatprep.subr.mxu0 0.0
    %927 = vmatpush1.msra.mxu0 0.0
    %928 = vmatprep.mubr.f32.mxu0 0.0
    %929 = vmatmul.mubr.f32.gmra.mrb[0].mxu0 %v862
    %v930 = vpop.f32.mrb[0].mxu0
    %v931 = vadd.f32 0.0, %v930
    %v932 = vpop.f32.mrb[0].mxu0
    %933 = vdwg.mxu0
    %v934 = vadd.f32 %v692, %v931
    %935 = vrot.lane.b32.xlu0 %v198, 104
    %v936 = vpop.permute.xlu0 %935
    %937 = vrot.lane.b32.xlu0 %v198, 72
    %v938 = vpop.permute.xlu0 %937
    %v939 = vsel %vm212, %v936, 0
    %v941 = vsel %vm212, %v938, 0
    %943 = vmatprep.subr.mxu0 0.0
    %944 = vmatpush1.xpose.msra.mxu0 %v941
    %945 = vmatprep.subr.mxu0 0.0
    %946 = vmatpush1.xpose.msra.mxu0 0.0
    %947 = vmatprep.subr.mxu0 0.0
    %948 = vmatpush1.xpose.msra.mxu0 0.0
    %949 = vmatprep.subr.mxu0 0.0
    %950 = vmatpush1.xpose.msra.mxu0 0.0
    %951 = vmatprep.subr.mxu0 0.0
    %952 = vmatpush1.xpose.msra.mxu0 0.0
    %953 = vmatprep.subr.mxu0 0.0
    %954 = vmatpush1.xpose.msra.mxu0 0.0
    %955 = vmatprep.subr.mxu0 0.0
    %956 = vmatpush1.xpose.msra.mxu0 0.0
    %957 = vmatprep.subr.mxu0 0.0
    %958 = vmatpush1.xpose.msra.mxu0 0.0
    %959 = vmatprep.subr.mxu0 0.0
    %960 = vmatpush1.xpose.msra.mxu0 0.0
    %961 = vmatprep.subr.mxu0 0.0
    %962 = vmatpush1.xpose.msra.mxu0 0.0
    %963 = vmatprep.subr.mxu0 0.0
    %964 = vmatpush1.xpose.msra.mxu0 0.0
    %965 = vmatprep.subr.mxu0 0.0
    %966 = vmatpush1.xpose.msra.mxu0 0.0
    %967 = vmatprep.subr.mxu0 0.0
    %968 = vmatpush1.xpose.msra.mxu0 0.0
    %969 = vmatprep.subr.mxu0 0.0
    %970 = vmatpush1.xpose.msra.mxu0 0.0
    %971 = vmatprep.subr.mxu0 0.0
    %972 = vmatpush1.xpose.msra.mxu0 0.0
    %973 = vmatprep.subr.mxu0 0.0
    %974 = vmatpush1.xpose.msra.mxu0 0.0
    %975 = vmatprep.subr.mxu0 0.0
    %976 = vmatpush1.xpose.msra.mxu0 0.0
    %977 = vmatprep.subr.mxu0 0.0
    %978 = vmatpush1.xpose.msra.mxu0 0.0
    %979 = vmatprep.subr.mxu0 0.0
    %980 = vmatpush1.xpose.msra.mxu0 0.0
    %981 = vmatprep.subr.mxu0 0.0
    %982 = vmatpush1.xpose.msra.mxu0 0.0
    %983 = vmatprep.subr.mxu0 0.0
    %984 = vmatpush1.xpose.msra.mxu0 0.0
    %985 = vmatprep.subr.mxu0 0.0
    %986 = vmatpush1.xpose.msra.mxu0 0.0
    %987 = vmatprep.subr.mxu0 0.0
    %988 = vmatpush1.xpose.msra.mxu0 0.0
    %989 = vmatprep.subr.mxu0 0.0
    %990 = vmatpush1.xpose.msra.mxu0 0.0
    %991 = vmatprep.subr.mxu0 0.0
    %992 = vmatpush1.xpose.msra.mxu0 0.0
    %993 = vmatprep.subr.mxu0 0.0
    %994 = vmatpush1.xpose.msra.mxu0 0.0
    %995 = vmatprep.subr.mxu0 0.0
    %996 = vmatpush1.xpose.msra.mxu0 0.0
    %997 = vmatprep.subr.mxu0 0.0
    %998 = vmatpush1.xpose.msra.mxu0 0.0
    %999 = vmatprep.subr.mxu0 0.0
    %1000 = vmatpush1.xpose.msra.mxu0 0.0
    %1001 = vmatprep.subr.mxu0 0.0
    %1002 = vmatpush1.xpose.msra.mxu0 0.0
    %1003 = vmatprep.subr.mxu0 0.0
    %1004 = vmatpush1.xpose.msra.mxu0 0.0
    %1005 = vmatprep.subr.mxu0 0.0
    %1006 = vmatpush1.xpose.msra.mxu0 0.0
    %1007 = vmatprep.mubr.f32.mxu0 0.0
    %1008 = vmatmul.mubr.f32.gmra.mrb[0].mxu0 %v939
    %v1009 = vpop.f32.mrb[0].mxu0
    %v1010 = vadd.f32 0.0, %v1009
    %v1011 = vpop.f32.mrb[0].mxu0
    %1012 = vdwg.mxu0
    %v1013 = vmul.f32 %v1010, 0.35355338
    %v1014 = vadd.f32 %v1013, %v208
    %v1015 = vsel %vm212, %v1014, -inf
    %1016 = vmax.xlane.f32.xlu0 %v1015
    %v1017 = vpop.xlane.xlu0 %1016
    %v1018 = vsub.f32 %v1014, %v1017
    %v1019 = vmul.f32 %v1018, 1.442695
    %v1020 = vpow.pop %v1019
    %v1021 = vsel %vm212, %v1020, 0.0
    %1022 = vadd.xlane.f32.xlu0 %v1021
    %v1023 = vpop.xlane.xlu0 %1022
    %v1024 = vrcp.pop %v1023
    %v1025 = vmul.f32 %v1020, %v1024
    %1026 = vrot.lane.b32.xlu0 %v198, 40
    %v1027 = vpop.permute.xlu0 %1026
    %v1030 = vsel %vm212, %v1025, 0
    %1032 = vmatprep.subr.mxu0 0.0
    %1033 = vmatpush1.msra.mxu0 %v1027
    %1034 = vmatprep.subr.mxu0 0.0
    %1035 = vmatpush1.msra.mxu0 0.0
    %1036 = vmatprep.subr.mxu0 0.0
    %1037 = vmatpush1.msra.mxu0 0.0
    %1038 = vmatprep.subr.mxu0 0.0
    %1039 = vmatpush1.msra.mxu0 0.0
    %1040 = vmatprep.subr.mxu0 0.0
    %1041 = vmatpush1.msra.mxu0 0.0
    %1042 = vmatprep.subr.mxu0 0.0
    %1043 = vmatpush1.msra.mxu0 0.0
    %1044 = vmatprep.subr.mxu0 0.0
    %1045 = vmatpush1.msra.mxu0 0.0
    %1046 = vmatprep.subr.mxu0 0.0
    %1047 = vmatpush1.msra.mxu0 0.0
    %1048 = vmatprep.subr.mxu0 0.0
    %1049 = vmatpush1.msra.mxu0 0.0
    %1050 = vmatprep.subr.mxu0 0.0
    %1051 = vmatpush1.msra.mxu0 0.0
    %1052 = vmatprep.subr.mxu0 0.0
    %1053 = vmatpush1.msra.mxu0 0.0
    %1054 = vmatprep.subr.mxu0 0.0
    %1055 = vmatpush1.msra.mxu0 0.0
    %1056 = vmatprep.subr.mxu0 0.0
    %1057 = vmatpush1.msra.mxu0 0.0
    %1058 = vmatprep.subr.mxu0 0.0
    %1059 = vmatpush1.msra.mxu0 0.0
    %1060 = vmatprep.subr.mxu0 0.0
    %1061 = vmatpush1.msra.mxu0 0.0
    %1062 = vmatprep.subr.mxu0 0.0
    %1063 = vmatpush1.msra.mxu0 0.0
    %1064 = vmatprep.subr.mxu0 0.0
    %1065 = vmatpush1.msra.mxu0 0.0
    %1066 = vmatprep.subr.mxu0 0.0
    %1067 = vmatpush1.msra.mxu0 0.0
    %1068 = vmatprep.subr.mxu0 0.0
    %1069 = vmatpush1.msra.mxu0 0.0
    %1070 = vmatprep.subr.mxu0 0.0
    %1071 = vmatpush1.msra.mxu0 0.0
    %1072 = vmatprep.subr.mxu0 0.0
    %1073 = vmatpush1.msra.mxu0 0.0
    %1074 = vmatprep.subr.mxu0 0.0
    %1075 = vmatpush1.msra.mxu0 0.0
    %1076 = vmatprep.subr.mxu0 0.0
    %1077 = vmatpush1.msra.mxu0 0.0
    %1078 = vmatprep.subr.mxu0 0.0
    %1079 = vmatpush1.msra.mxu0 0.0
    %1080 = vmatprep.subr.mxu0 0.0
    %1081 = vmatpush1.msra.mxu0 0.0
    %1082 = vmatprep.subr.mxu0 0.0
    %1083 = vmatpush1.msra.mxu0 0.0
    %1084 = vmatprep.subr.mxu0 0.0
    %1085 = vmatpush1.msra.mxu0 0.0
    %1086 = vmatprep.subr.mxu0 0.0
    %1087 = vmatpush1.msra.mxu0 0.0
    %1088 = vmatprep.subr.mxu0 0.0
    %1089 = vmatpush1.msra.mxu0 0.0
    %1090 = vmatprep.subr.mxu0 0.0
    %1091 = vmatpush1.msra.mxu0 0.0
    %1092 = vmatprep.subr.mxu0 0.0
    %1093 = vmatpush1.msra.mxu0 0.0
    %1094 = vmatprep.subr.mxu0 0.0
    %1095 = vmatpush1.msra.mxu0 0.0
    %1096 = vmatprep.mubr.f32.mxu0 0.0
    %1097 = vmatmul.mubr.f32.gmra.mrb[0].mxu0 %v1030
    %v1098 = vpop.f32.mrb[0].mxu0
    %v1099 = vadd.f32 0.0, %v1098
    %v1100 = vpop.f32.mrb[0].mxu0
    %1101 = vdwg.mxu0
    %v1102 = vld [vmem:[%s3 + $0x18] sm:$0xff]
    %v1104 = vsel %vm212, %v1099, 0
    %1106 = vmatprep.subr.mxu0 0.0
    %1107 = vmatpush1.msra.mxu0 %v1102
    %1108 = vmatprep.subr.mxu0 0.0
    %1109 = vmatpush1.msra.mxu0 0.0
    %1110 = vmatprep.subr.mxu0 0.0
    %1111 = vmatpush1.msra.mxu0 0.0
    %1112 = vmatprep.subr.mxu0 0.0
    %1113 = vmatpush1.msra.mxu0 0.0
    %1114 = vmatprep.subr.mxu0 0.0
    %1115 = vmatpush1.msra.mxu0 0.0
    %1116 = vmatprep.subr.mxu0 0.0
    %1117 = vmatpush1.msra.mxu0 0.0
    %1118 = vmatprep.subr.mxu0 0.0
    %1119 = vmatpush1.msra.mxu0 0.0
    %1120 = vmatprep.subr.mxu0 0.0
    %1121 = vmatpush1.msra.mxu0 0.0
    %1122 = vmatprep.subr.mxu0 0.0
    %1123 = vmatpush1.msra.mxu0 0.0
    %1124 = vmatprep.subr.mxu0 0.0
    %1125 = vmatpush1.msra.mxu0 0.0
    %1126 = vmatprep.subr.mxu0 0.0
    %1127 = vmatpush1.msra.mxu0 0.0
    %1128 = vmatprep.subr.mxu0 0.0
    %1129 = vmatpush1.msra.mxu0 0.0
    %1130 = vmatprep.subr.mxu0 0.0
    %1131 = vmatpush1.msra.mxu0 0.0
    %1132 = vmatprep.subr.mxu0 0.0
    %1133 = vmatpush1.msra.mxu0 0.0
    %1134 = vmatprep.subr.mxu0 0.0
    %1135 = vmatpush1.msra.mxu0 0.0
    %1136 = vmatprep.subr.mxu0 0.0
    %1137 = vmatpush1.msra.mxu0 0.0
    %1138 = vmatprep.subr.mxu0 0.0
    %1139 = vmatpush1.msra.mxu0 0.0
    %1140 = vmatprep.subr.mxu0 0.0
    %1141 = vmatpush1.msra.mxu0 0.0
    %1142 = vmatprep.subr.mxu0 0.0
    %1143 = vmatpush1.msra.mxu0 0.0
    %1144 = vmatprep.subr.mxu0 0.0
    %1145 = vmatpush1.msra.mxu0 0.0
    %1146 = vmatprep.subr.mxu0 0.0
    %1147 = vmatpush1.msra.mxu0 0.0
    %1148 = vmatprep.subr.mxu0 0.0
    %1149 = vmatpush1.msra.mxu0 0.0
    %1150 = vmatprep.subr.mxu0 0.0
    %1151 = vmatpush1.msra.mxu0 0.0
    %1152 = vmatprep.subr.mxu0 0.0
    %1153 = vmatpush1.msra.mxu0 0.0
    %1154 = vmatprep.subr.mxu0 0.0
    %1155 = vmatpush1.msra.mxu0 0.0
    %1156 = vmatprep.subr.mxu0 0.0
    %1157 = vmatpush1.msra.mxu0 0.0
    %1158 = vmatprep.subr.mxu0 0.0
    %1159 = vmatpush1.msra.mxu0 0.0
    %1160 = vmatprep.subr.mxu0 0.0
    %1161 = vmatpush1.msra.mxu0 0.0
    %1162 = vmatprep.subr.mxu0 0.0
    %1163 = vmatpush1.msra.mxu0 0.0
    %1164 = vmatprep.subr.mxu0 0.0
    %1165 = vmatpush1.msra.mxu0 0.0
    %1166 = vmatprep.subr.mxu0 0.0
    %1167 = vmatpush1.msra.mxu0 0.0
    %1168 = vmatprep.subr.mxu0 0.0
    %1169 = vmatpush1.msra.mxu0 0.0
    %1170 = vmatprep.mubr.f32.mxu0 0.0
    %1171 = vmatmul.mubr.f32.gmra.mrb[0].mxu0 %v1104
    %v1172 = vpop.f32.mrb[0].mxu0
    %v1173 = vadd.f32 0.0, %v1172
    %v1174 = vpop.f32.mrb[0].mxu0
    %1175 = vdwg.mxu0
    %v1176 = vadd.f32 %v934, %v1173
    %1177 = vst.msk [vmem:[#allocation7] sm:$0xff] %vm66, %v1176
    %s1178 = scalar_lea.vmem [#allocation5], 8
    %v1179 = vld [vmem:[%s1178] sm:$0xff]
    %vm1180 = vcmp.eq.s32.totalorder %v1179, 0
    %v1181 = vsel %vm1180, -1e+09, 0.0
    %1183 = vrot.lane.b32.xlu0 %v203, 96
    %v1184 = vpop.permute.xlu0 %1183
    %v1185 = vsel %vm212, %v203, 0
    %v1187 = vsel %vm212, %v1184, 0
    %1189 = vmatprep.subr.mxu0 0.0
    %1190 = vmatpush1.xpose.msra.mxu0 %v1187
    %1191 = vmatprep.subr.mxu0 0.0
    %1192 = vmatpush1.xpose.msra.mxu0 0.0
    %1193 = vmatprep.subr.mxu0 0.0
    %1194 = vmatpush1.xpose.msra.mxu0 0.0
    %1195 = vmatprep.subr.mxu0 0.0
    %1196 = vmatpush1.xpose.msra.mxu0 0.0
    %1197 = vmatprep.subr.mxu0 0.0
    %1198 = vmatpush1.xpose.msra.mxu0 0.0
    %1199 = vmatprep.subr.mxu0 0.0
    %1200 = vmatpush1.xpose.msra.mxu0 0.0
    %1201 = vmatprep.subr.mxu0 0.0
    %1202 = vmatpush1.xpose.msra.mxu0 0.0
    %1203 = vmatprep.subr.mxu0 0.0
    %1204 = vmatpush1.xpose.msra.mxu0 0.0
    %1205 = vmatprep.subr.mxu0 0.0
    %1206 = vmatpush1.xpose.msra.mxu0 0.0
    %1207 = vmatprep.subr.mxu0 0.0
    %1208 = vmatpush1.xpose.msra.mxu0 0.0
    %1209 = vmatprep.subr.mxu0 0.0
    %1210 = vmatpush1.xpose.msra.mxu0 0.0
    %1211 = vmatprep.subr.mxu0 0.0
    %1212 = vmatpush1.xpose.msra.mxu0 0.0
    %1213 = vmatprep.subr.mxu0 0.0
    %1214 = vmatpush1.xpose.msra.mxu0 0.0
    %1215 = vmatprep.subr.mxu0 0.0
    %1216 = vmatpush1.xpose.msra.mxu0 0.0
    %1217 = vmatprep.subr.mxu0 0.0
    %1218 = vmatpush1.xpose.msra.mxu0 0.0
    %1219 = vmatprep.subr.mxu0 0.0
    %1220 = vmatpush1.xpose.msra.mxu0 0.0
    %1221 = vmatprep.subr.mxu0 0.0
    %1222 = vmatpush1.xpose.msra.mxu0 0.0
    %1223 = vmatprep.subr.mxu0 0.0
    %1224 = vmatpush1.xpose.msra.mxu0 0.0
    %1225 = vmatprep.subr.mxu0 0.0
    %1226 = vmatpush1.xpose.msra.mxu0 0.0
    %1227 = vmatprep.subr.mxu0 0.0
    %1228 = vmatpush1.xpose.msra.mxu0 0.0
    %1229 = vmatprep.subr.mxu0 0.0
    %1230 = vmatpush1.xpose.msra.mxu0 0.0
    %1231 = vmatprep.subr.mxu0 0.0
    %1232 = vmatpush1.xpose.msra.mxu0 0.0
    %1233 = vmatprep.subr.mxu0 0.0
    %1234 = vmatpush1.xpose.msra.mxu0 0.0
    %1235 = vmatprep.subr.mxu0 0.0
    %1236 = vmatpush1.xpose.msra.mxu0 0.0
    %1237 = vmatprep.subr.mxu0 0.0
    %1238 = vmatpush1.xpose.msra.mxu0 0.0
    %1239 = vmatprep.subr.mxu0 0.0
    %1240 = vmatpush1.xpose.msra.mxu0 0.0
    %1241 = vmatprep.subr.mxu0 0.0
    %1242 = vmatpush1.xpose.msra.mxu0 0.0
    %1243 = vmatprep.subr.mxu0 0.0
    %1244 = vmatpush1.xpose.msra.mxu0 0.0
    %1245 = vmatprep.subr.mxu0 0.0
    %1246 = vmatpush1.xpose.msra.mxu0 0.0
    %1247 = vmatprep.subr.mxu0 0.0
    %1248 = vmatpush1.xpose.msra.mxu0 0.0
    %1249 = vmatprep.subr.mxu0 0.0
    %1250 = vmatpush1.xpose.msra.mxu0 0.0
    %1251 = vmatprep.subr.mxu0 0.0
    %1252 = vmatpush1.xpose.msra.mxu0 0.0
    %1253 = vmatprep.mubr.f32.mxu0 0.0
    %1254 = vmatmul.mubr.f32.gmra.mrb[0].mxu0 %v1185
    %v1255 = vpop.f32.mrb[0].mxu0
    %v1256 = vadd.f32 0.0, %v1255
    %v1257 = vpop.f32.mrb[0].mxu0
    %1258 = vdwg.mxu0
    %v1259 = vmul.f32 %v1256, 0.35355338
    %v1260 = vadd.f32 %v1259, %v1181
    %v1261 = vsel %vm212, %v1260, -inf
    %1262 = vmax.xlane.f32.xlu0 %v1261
    %v1263 = vpop.xlane.xlu0 %1262
    %v1264 = vsub.f32 %v1260, %v1263
    %v1265 = vmul.f32 %v1264, 1.442695
    %v1266 = vpow.pop %v1265
    %v1267 = vsel %vm212, %v1266, 0.0
    %1268 = vadd.xlane.f32.xlu0 %v1267
    %v1269 = vpop.xlane.xlu0 %1268
    %v1270 = vrcp.pop %v1269
    %v1271 = vmul.f32 %v1266, %v1270
    %1272 = vrot.lane.b32.xlu0 %v203, 64
    %v1273 = vpop.permute.xlu0 %1272
    %v1276 = vsel %vm212, %v1271, 0
    %1278 = vmatprep.subr.mxu0 0.0
    %1279 = vmatpush1.msra.mxu0 %v1273
    %1280 = vmatprep.subr.mxu0 0.0
    %1281 = vmatpush1.msra.mxu0 0.0
    %1282 = vmatprep.subr.mxu0 0.0
    %1283 = vmatpush1.msra.mxu0 0.0
    %1284 = vmatprep.subr.mxu0 0.0
    %1285 = vmatpush1.msra.mxu0 0.0
    %1286 = vmatprep.subr.mxu0 0.0
    %1287 = vmatpush1.msra.mxu0 0.0
    %1288 = vmatprep.subr.mxu0 0.0
    %1289 = vmatpush1.msra.mxu0 0.0
    %1290 = vmatprep.subr.mxu0 0.0
    %1291 = vmatpush1.msra.mxu0 0.0
    %1292 = vmatprep.subr.mxu0 0.0
    %1293 = vmatpush1.msra.mxu0 0.0
    %1294 = vmatprep.subr.mxu0 0.0
    %1295 = vmatpush1.msra.mxu0 0.0
    %1296 = vmatprep.subr.mxu0 0.0
    %1297 = vmatpush1.msra.mxu0 0.0
    %1298 = vmatprep.subr.mxu0 0.0
    %1299 = vmatpush1.msra.mxu0 0.0
    %1300 = vmatprep.subr.mxu0 0.0
    %1301 = vmatpush1.msra.mxu0 0.0
    %1302 = vmatprep.subr.mxu0 0.0
    %1303 = vmatpush1.msra.mxu0 0.0
    %1304 = vmatprep.subr.mxu0 0.0
    %1305 = vmatpush1.msra.mxu0 0.0
    %1306 = vmatprep.subr.mxu0 0.0
    %1307 = vmatpush1.msra.mxu0 0.0
    %1308 = vmatprep.subr.mxu0 0.0
    %1309 = vmatpush1.msra.mxu0 0.0
    %1310 = vmatprep.subr.mxu0 0.0
    %1311 = vmatpush1.msra.mxu0 0.0
    %1312 = vmatprep.subr.mxu0 0.0
    %1313 = vmatpush1.msra.mxu0 0.0
    %1314 = vmatprep.subr.mxu0 0.0
    %1315 = vmatpush1.msra.mxu0 0.0
    %1316 = vmatprep.subr.mxu0 0.0
    %1317 = vmatpush1.msra.mxu0 0.0
    %1318 = vmatprep.subr.mxu0 0.0
    %1319 = vmatpush1.msra.mxu0 0.0
    %1320 = vmatprep.subr.mxu0 0.0
    %1321 = vmatpush1.msra.mxu0 0.0
    %1322 = vmatprep.subr.mxu0 0.0
    %1323 = vmatpush1.msra.mxu0 0.0
    %1324 = vmatprep.subr.mxu0 0.0
    %1325 = vmatpush1.msra.mxu0 0.0
    %1326 = vmatprep.subr.mxu0 0.0
    %1327 = vmatpush1.msra.mxu0 0.0
    %1328 = vmatprep.subr.mxu0 0.0
    %1329 = vmatpush1.msra.mxu0 0.0
    %1330 = vmatprep.subr.mxu0 0.0
    %1331 = vmatpush1.msra.mxu0 0.0
    %1332 = vmatprep.subr.mxu0 0.0
    %1333 = vmatpush1.msra.mxu0 0.0
    %1334 = vmatprep.subr.mxu0 0.0
    %1335 = vmatpush1.msra.mxu0 0.0
    %1336 = vmatprep.subr.mxu0 0.0
    %1337 = vmatpush1.msra.mxu0 0.0
    %1338 = vmatprep.subr.mxu0 0.0
    %1339 = vmatpush1.msra.mxu0 0.0
    %1340 = vmatprep.subr.mxu0 0.0
    %1341 = vmatpush1.msra.mxu0 0.0
    %1342 = vmatprep.mubr.f32.mxu0 0.0
    %1343 = vmatmul.mubr.f32.gmra.mrb[0].mxu0 %v1276
    %v1344 = vpop.f32.mrb[0].mxu0
    %v1345 = vadd.f32 0.0, %v1344
    %v1346 = vpop.f32.mrb[0].mxu0
    %1347 = vdwg.mxu0
    %v1348 = vld [vmem:[%s3] sm:$0xff]
    %v1350 = vsel %vm212, %v1345, 0
    %1352 = vmatprep.subr.mxu0 0.0
    %1353 = vmatpush1.msra.mxu0 %v1348
    %1354 = vmatprep.subr.mxu0 0.0
    %1355 = vmatpush1.msra.mxu0 0.0
    %1356 = vmatprep.subr.mxu0 0.0
    %1357 = vmatpush1.msra.mxu0 0.0
    %1358 = vmatprep.subr.mxu0 0.0
    %1359 = vmatpush1.msra.mxu0 0.0
    %1360 = vmatprep.subr.mxu0 0.0
    %1361 = vmatpush1.msra.mxu0 0.0
    %1362 = vmatprep.subr.mxu0 0.0
    %1363 = vmatpush1.msra.mxu0 0.0
    %1364 = vmatprep.subr.mxu0 0.0
    %1365 = vmatpush1.msra.mxu0 0.0
    %1366 = vmatprep.subr.mxu0 0.0
    %1367 = vmatpush1.msra.mxu0 0.0
    %1368 = vmatprep.subr.mxu0 0.0
    %1369 = vmatpush1.msra.mxu0 0.0
    %1370 = vmatprep.subr.mxu0 0.0
    %1371 = vmatpush1.msra.mxu0 0.0
    %1372 = vmatprep.subr.mxu0 0.0
    %1373 = vmatpush1.msra.mxu0 0.0
    %1374 = vmatprep.subr.mxu0 0.0
    %1375 = vmatpush1.msra.mxu0 0.0
    %1376 = vmatprep.subr.mxu0 0.0
    %1377 = vmatpush1.msra.mxu0 0.0
    %1378 = vmatprep.subr.mxu0 0.0
    %1379 = vmatpush1.msra.mxu0 0.0
    %1380 = vmatprep.subr.mxu0 0.0
    %1381 = vmatpush1.msra.mxu0 0.0
    %1382 = vmatprep.subr.mxu0 0.0
    %1383 = vmatpush1.msra.mxu0 0.0
    %1384 = vmatprep.subr.mxu0 0.0
    %1385 = vmatpush1.msra.mxu0 0.0
    %1386 = vmatprep.subr.mxu0 0.0
    %1387 = vmatpush1.msra.mxu0 0.0
    %1388 = vmatprep.subr.mxu0 0.0
    %1389 = vmatpush1.msra.mxu0 0.0
    %1390 = vmatprep.subr.mxu0 0.0
    %1391 = vmatpush1.msra.mxu0 0.0
    %1392 = vmatprep.subr.mxu0 0.0
    %1393 = vmatpush1.msra.mxu0 0.0
    %1394 = vmatprep.subr.mxu0 0.0
    %1395 = vmatpush1.msra.mxu0 0.0
    %1396 = vmatprep.subr.mxu0 0.0
    %1397 = vmatpush1.msra.mxu0 0.0
    %1398 = vmatprep.subr.mxu0 0.0
    %1399 = vmatpush1.msra.mxu0 0.0
    %1400 = vmatprep.subr.mxu0 0.0
    %1401 = vmatpush1.msra.mxu0 0.0
    %1402 = vmatprep.subr.mxu0 0.0
    %1403 = vmatpush1.msra.mxu0 0.0
    %1404 = vmatprep.subr.mxu0 0.0
    %1405 = vmatpush1.msra.mxu0 0.0
    %1406 = vmatprep.subr.mxu0 0.0
    %1407 = vmatpush1.msra.mxu0 0.0
    %1408 = vmatprep.subr.mxu0 0.0
    %1409 = vmatpush1.msra.mxu0 0.0
    %1410 = vmatprep.subr.mxu0 0.0
    %1411 = vmatpush1.msra.mxu0 0.0
    %1412 = vmatprep.subr.mxu0 0.0
    %1413 = vmatpush1.msra.mxu0 0.0
    %1414 = vmatprep.subr.mxu0 0.0
    %1415 = vmatpush1.msra.mxu0 0.0
    %1416 = vmatprep.mubr.f32.mxu0 0.0
    %1417 = vmatmul.mubr.f32.gmra.mrb[0].mxu0 %v1350
    %v1418 = vpop.f32.mrb[0].mxu0
    %v1419 = vadd.f32 0.0, %v1418
    %v1420 = vpop.f32.mrb[0].mxu0
    %1421 = vdwg.mxu0
    %v1422 = vadd.f32 %v59, %v1419
    %1423 = vrot.lane.b32.xlu0 %v203, 120
    %v1424 = vpop.permute.xlu0 %1423
    %1425 = vrot.lane.b32.xlu0 %v203, 88
    %v1426 = vpop.permute.xlu0 %1425
    %v1427 = vsel %vm212, %v1424, 0
    %v1429 = vsel %vm212, %v1426, 0
    %1431 = vmatprep.subr.mxu0 0.0
    %1432 = vmatpush1.xpose.msra.mxu0 %v1429
    %1433 = vmatprep.subr.mxu0 0.0
    %1434 = vmatpush1.xpose.msra.mxu0 0.0
    %1435 = vmatprep.subr.mxu0 0.0
    %1436 = vmatpush1.xpose.msra.mxu0 0.0
    %1437 = vmatprep.subr.mxu0 0.0
    %1438 = vmatpush1.xpose.msra.mxu0 0.0
    %1439 = vmatprep.subr.mxu0 0.0
    %1440 = vmatpush1.xpose.msra.mxu0 0.0
    %1441 = vmatprep.subr.mxu0 0.0
    %1442 = vmatpush1.xpose.msra.mxu0 0.0
    %1443 = vmatprep.subr.mxu0 0.0
    %1444 = vmatpush1.xpose.msra.mxu0 0.0
    %1445 = vmatprep.subr.mxu0 0.0
    %1446 = vmatpush1.xpose.msra.mxu0 0.0
    %1447 = vmatprep.subr.mxu0 0.0
    %1448 = vmatpush1.xpose.msra.mxu0 0.0
    %1449 = vmatprep.subr.mxu0 0.0
    %1450 = vmatpush1.xpose.msra.mxu0 0.0
    %1451 = vmatprep.subr.mxu0 0.0
    %1452 = vmatpush1.xpose.msra.mxu0 0.0
    %1453 = vmatprep.subr.mxu0 0.0
    %1454 = vmatpush1.xpose.msra.mxu0 0.0
    %1455 = vmatprep.subr.mxu0 0.0
    %1456 = vmatpush1.xpose.msra.mxu0 0.0
    %1457 = vmatprep.subr.mxu0 0.0
    %1458 = vmatpush1.xpose.msra.mxu0 0.0
    %1459 = vmatprep.subr.mxu0 0.0
    %1460 = vmatpush1.xpose.msra.mxu0 0.0
    %1461 = vmatprep.subr.mxu0 0.0
    %1462 = vmatpush1.xpose.msra.mxu0 0.0
    %1463 = vmatprep.subr.mxu0 0.0
    %1464 = vmatpush1.xpose.msra.mxu0 0.0
    %1465 = vmatprep.subr.mxu0 0.0
    %1466 = vmatpush1.xpose.msra.mxu0 0.0
    %1467 = vmatprep.subr.mxu0 0.0
    %1468 = vmatpush1.xpose.msra.mxu0 0.0
    %1469 = vmatprep.subr.mxu0 0.0
    %1470 = vmatpush1.xpose.msra.mxu0 0.0
    %1471 = vmatprep.subr.mxu0 0.0
    %1472 = vmatpush1.xpose.msra.mxu0 0.0
    %1473 = vmatprep.subr.mxu0 0.0
    %1474 = vmatpush1.xpose.msra.mxu0 0.0
    %1475 = vmatprep.subr.mxu0 0.0
    %1476 = vmatpush1.xpose.msra.mxu0 0.0
    %1477 = vmatprep.subr.mxu0 0.0
    %1478 = vmatpush1.xpose.msra.mxu0 0.0
    %1479 = vmatprep.subr.mxu0 0.0
    %1480 = vmatpush1.xpose.msra.mxu0 0.0
    %1481 = vmatprep.subr.mxu0 0.0
    %1482 = vmatpush1.xpose.msra.mxu0 0.0
    %1483 = vmatprep.subr.mxu0 0.0
    %1484 = vmatpush1.xpose.msra.mxu0 0.0
    %1485 = vmatprep.subr.mxu0 0.0
    %1486 = vmatpush1.xpose.msra.mxu0 0.0
    %1487 = vmatprep.subr.mxu0 0.0
    %1488 = vmatpush1.xpose.msra.mxu0 0.0
    %1489 = vmatprep.subr.mxu0 0.0
    %1490 = vmatpush1.xpose.msra.mxu0 0.0
    %1491 = vmatprep.subr.mxu0 0.0
    %1492 = vmatpush1.xpose.msra.mxu0 0.0
    %1493 = vmatprep.subr.mxu0 0.0
    %1494 = vmatpush1.xpose.msra.mxu0 0.0
    %1495 = vmatprep.mubr.f32.mxu0 0.0
    %1496 = vmatmul.mubr.f32.gmra.mrb[0].mxu0 %v1427
    %v1497 = vpop.f32.mrb[0].mxu0
    %v1498 = vadd.f32 0.0, %v1497
    %v1499 = vpop.f32.mrb[0].mxu0
    %1500 = vdwg.mxu0
    %v1501 = vmul.f32 %v1498, 0.35355338
    %v1502 = vadd.f32 %v1501, %v1181
    %v1503 = vsel %vm212, %v1502, -inf
    %1504 = vmax.xlane.f32.xlu0 %v1503
    %v1505 = vpop.xlane.xlu0 %1504
    %v1506 = vsub.f32 %v1502, %v1505
    %v1507 = vmul.f32 %v1506, 1.442695
    %v1508 = vpow.pop %v1507
    %v1509 = vsel %vm212, %v1508, 0.0
    %1510 = vadd.xlane.f32.xlu0 %v1509
    %v1511 = vpop.xlane.xlu0 %1510
    %v1512 = vrcp.pop %v1511
    %v1513 = vmul.f32 %v1508, %v1512
    %1514 = vrot.lane.b32.xlu0 %v203, 56
    %v1515 = vpop.permute.xlu0 %1514
    %v1518 = vsel %vm212, %v1513, 0
    %1520 = vmatprep.subr.mxu0 0.0
    %1521 = vmatpush1.msra.mxu0 %v1515
    %1522 = vmatprep.subr.mxu0 0.0
    %1523 = vmatpush1.msra.mxu0 0.0
    %1524 = vmatprep.subr.mxu0 0.0
    %1525 = vmatpush1.msra.mxu0 0.0
    %1526 = vmatprep.subr.mxu0 0.0
    %1527 = vmatpush1.msra.mxu0 0.0
    %1528 = vmatprep.subr.mxu0 0.0
    %1529 = vmatpush1.msra.mxu0 0.0
    %1530 = vmatprep.subr.mxu0 0.0
    %1531 = vmatpush1.msra.mxu0 0.0
    %1532 = vmatprep.subr.mxu0 0.0
    %1533 = vmatpush1.msra.mxu0 0.0
    %1534 = vmatprep.subr.mxu0 0.0
    %1535 = vmatpush1.msra.mxu0 0.0
    %1536 = vmatprep.subr.mxu0 0.0
    %1537 = vmatpush1.msra.mxu0 0.0
    %1538 = vmatprep.subr.mxu0 0.0
    %1539 = vmatpush1.msra.mxu0 0.0
    %1540 = vmatprep.subr.mxu0 0.0
    %1541 = vmatpush1.msra.mxu0 0.0
    %1542 = vmatprep.subr.mxu0 0.0
    %1543 = vmatpush1.msra.mxu0 0.0
    %1544 = vmatprep.subr.mxu0 0.0
    %1545 = vmatpush1.msra.mxu0 0.0
    %1546 = vmatprep.subr.mxu0 0.0
    %1547 = vmatpush1.msra.mxu0 0.0
    %1548 = vmatprep.subr.mxu0 0.0
    %1549 = vmatpush1.msra.mxu0 0.0
    %1550 = vmatprep.subr.mxu0 0.0
    %1551 = vmatpush1.msra.mxu0 0.0
    %1552 = vmatprep.subr.mxu0 0.0
    %1553 = vmatpush1.msra.mxu0 0.0
    %1554 = vmatprep.subr.mxu0 0.0
    %1555 = vmatpush1.msra.mxu0 0.0
    %1556 = vmatprep.subr.mxu0 0.0
    %1557 = vmatpush1.msra.mxu0 0.0
    %1558 = vmatprep.subr.mxu0 0.0
    %1559 = vmatpush1.msra.mxu0 0.0
    %1560 = vmatprep.subr.mxu0 0.0
    %1561 = vmatpush1.msra.mxu0 0.0
    %1562 = vmatprep.subr.mxu0 0.0
    %1563 = vmatpush1.msra.mxu0 0.0
    %1564 = vmatprep.subr.mxu0 0.0
    %1565 = vmatpush1.msra.mxu0 0.0
    %1566 = vmatprep.subr.mxu0 0.0
    %1567 = vmatpush1.msra.mxu0 0.0
    %1568 = vmatprep.subr.mxu0 0.0
    %1569 = vmatpush1.msra.mxu0 0.0
    %1570 = vmatprep.subr.mxu0 0.0
    %1571 = vmatpush1.msra.mxu0 0.0
    %1572 = vmatprep.subr.mxu0 0.0
    %1573 = vmatpush1.msra.mxu0 0.0
    %1574 = vmatprep.subr.mxu0 0.0
    %1575 = vmatpush1.msra.mxu0 0.0
    %1576 = vmatprep.subr.mxu0 0.0
    %1577 = vmatpush1.msra.mxu0 0.0
    %1578 = vmatprep.subr.mxu0 0.0
    %1579 = vmatpush1.msra.mxu0 0.0
    %1580 = vmatprep.subr.mxu0 0.0
    %1581 = vmatpush1.msra.mxu0 0.0
    %1582 = vmatprep.subr.mxu0 0.0
    %1583 = vmatpush1.msra.mxu0 0.0
    %1584 = vmatprep.mubr.f32.mxu0 0.0
    %1585 = vmatmul.mubr.f32.gmra.mrb[0].mxu0 %v1518
    %v1586 = vpop.f32.mrb[0].mxu0
    %v1587 = vadd.f32 0.0, %v1586
    %v1588 = vpop.f32.mrb[0].mxu0
    %1589 = vdwg.mxu0
    %v1590 = vld [vmem:[%s3 + $0x8] sm:$0xff]
    %v1592 = vsel %vm212, %v1587, 0
    %1594 = vmatprep.subr.mxu0 0.0
    %1595 = vmatpush1.msra.mxu0 %v1590
    %1596 = vmatprep.subr.mxu0 0.0
    %1597 = vmatpush1.msra.mxu0 0.0
    %1598 = vmatprep.subr.mxu0 0.0
    %1599 = vmatpush1.msra.mxu0 0.0
    %1600 = vmatprep.subr.mxu0 0.0
    %1601 = vmatpush1.msra.mxu0 0.0
    %1602 = vmatprep.subr.mxu0 0.0
    %1603 = vmatpush1.msra.mxu0 0.0
    %1604 = vmatprep.subr.mxu0 0.0
    %1605 = vmatpush1.msra.mxu0 0.0
    %1606 = vmatprep.subr.mxu0 0.0
    %1607 = vmatpush1.msra.mxu0 0.0
    %1608 = vmatprep.subr.mxu0 0.0
    %1609 = vmatpush1.msra.mxu0 0.0
    %1610 = vmatprep.subr.mxu0 0.0
    %1611 = vmatpush1.msra.mxu0 0.0
    %1612 = vmatprep.subr.mxu0 0.0
    %1613 = vmatpush1.msra.mxu0 0.0
    %1614 = vmatprep.subr.mxu0 0.0
    %1615 = vmatpush1.msra.mxu0 0.0
    %1616 = vmatprep.subr.mxu0 0.0
    %1617 = vmatpush1.msra.mxu0 0.0
    %1618 = vmatprep.subr.mxu0 0.0
    %1619 = vmatpush1.msra.mxu0 0.0
    %1620 = vmatprep.subr.mxu0 0.0
    %1621 = vmatpush1.msra.mxu0 0.0
    %1622 = vmatprep.subr.mxu0 0.0
    %1623 = vmatpush1.msra.mxu0 0.0
    %1624 = vmatprep.subr.mxu0 0.0
    %1625 = vmatpush1.msra.mxu0 0.0
    %1626 = vmatprep.subr.mxu0 0.0
    %1627 = vmatpush1.msra.mxu0 0.0
    %1628 = vmatprep.subr.mxu0 0.0
    %1629 = vmatpush1.msra.mxu0 0.0
    %1630 = vmatprep.subr.mxu0 0.0
    %1631 = vmatpush1.msra.mxu0 0.0
    %1632 = vmatprep.subr.mxu0 0.0
    %1633 = vmatpush1.msra.mxu0 0.0
    %1634 = vmatprep.subr.mxu0 0.0
    %1635 = vmatpush1.msra.mxu0 0.0
    %1636 = vmatprep.subr.mxu0 0.0
    %1637 = vmatpush1.msra.mxu0 0.0
    %1638 = vmatprep.subr.mxu0 0.0
    %1639 = vmatpush1.msra.mxu0 0.0
    %1640 = vmatprep.subr.mxu0 0.0
    %1641 = vmatpush1.msra.mxu0 0.0
    %1642 = vmatprep.subr.mxu0 0.0
    %1643 = vmatpush1.msra.mxu0 0.0
    %1644 = vmatprep.subr.mxu0 0.0
    %1645 = vmatpush1.msra.mxu0 0.0
    %1646 = vmatprep.subr.mxu0 0.0
    %1647 = vmatpush1.msra.mxu0 0.0
    %1648 = vmatprep.subr.mxu0 0.0
    %1649 = vmatpush1.msra.mxu0 0.0
    %1650 = vmatprep.subr.mxu0 0.0
    %1651 = vmatpush1.msra.mxu0 0.0
    %1652 = vmatprep.subr.mxu0 0.0
    %1653 = vmatpush1.msra.mxu0 0.0
    %1654 = vmatprep.subr.mxu0 0.0
    %1655 = vmatpush1.msra.mxu0 0.0
    %1656 = vmatprep.subr.mxu0 0.0
    %1657 = vmatpush1.msra.mxu0 0.0
    %1658 = vmatprep.mubr.f32.mxu0 0.0
    %1659 = vmatmul.mubr.f32.gmra.mrb[0].mxu0 %v1592
    %v1660 = vpop.f32.mrb[0].mxu0
    %v1661 = vadd.f32 0.0, %v1660
    %v1662 = vpop.f32.mrb[0].mxu0
    %1663 = vdwg.mxu0
    %v1664 = vadd.f32 %v1422, %v1661
    %1665 = vrot.lane.b32.xlu0 %v203, 112
    %v1666 = vpop.permute.xlu0 %1665
    %1667 = vrot.lane.b32.xlu0 %v203, 80
    %v1668 = vpop.permute.xlu0 %1667
    %v1669 = vsel %vm212, %v1666, 0
    %v1671 = vsel %vm212, %v1668, 0
    %1673 = vmatprep.subr.mxu0 0.0
    %1674 = vmatpush1.xpose.msra.mxu0 %v1671
    %1675 = vmatprep.subr.mxu0 0.0
    %1676 = vmatpush1.xpose.msra.mxu0 0.0
    %1677 = vmatprep.subr.mxu0 0.0
    %1678 = vmatpush1.xpose.msra.mxu0 0.0
    %1679 = vmatprep.subr.mxu0 0.0
    %1680 = vmatpush1.xpose.msra.mxu0 0.0
    %1681 = vmatprep.subr.mxu0 0.0
    %1682 = vmatpush1.xpose.msra.mxu0 0.0
    %1683 = vmatprep.subr.mxu0 0.0
    %1684 = vmatpush1.xpose.msra.mxu0 0.0
    %1685 = vmatprep.subr.mxu0 0.0
    %1686 = vmatpush1.xpose.msra.mxu0 0.0
    %1687 = vmatprep.subr.mxu0 0.0
    %1688 = vmatpush1.xpose.msra.mxu0 0.0
    %1689 = vmatprep.subr.mxu0 0.0
    %1690 = vmatpush1.xpose.msra.mxu0 0.0
    %1691 = vmatprep.subr.mxu0 0.0
    %1692 = vmatpush1.xpose.msra.mxu0 0.0
    %1693 = vmatprep.subr.mxu0 0.0
    %1694 = vmatpush1.xpose.msra.mxu0 0.0
    %1695 = vmatprep.subr.mxu0 0.0
    %1696 = vmatpush1.xpose.msra.mxu0 0.0
    %1697 = vmatprep.subr.mxu0 0.0
    %1698 = vmatpush1.xpose.msra.mxu0 0.0
    %1699 = vmatprep.subr.mxu0 0.0
    %1700 = vmatpush1.xpose.msra.mxu0 0.0
    %1701 = vmatprep.subr.mxu0 0.0
    %1702 = vmatpush1.xpose.msra.mxu0 0.0
    %1703 = vmatprep.subr.mxu0 0.0
    %1704 = vmatpush1.xpose.msra.mxu0 0.0
    %1705 = vmatprep.subr.mxu0 0.0
    %1706 = vmatpush1.xpose.msra.mxu0 0.0
    %1707 = vmatprep.subr.mxu0 0.0
    %1708 = vmatpush1.xpose.msra.mxu0 0.0
    %1709 = vmatprep.subr.mxu0 0.0
    %1710 = vmatpush1.xpose.msra.mxu0 0.0
    %1711 = vmatprep.subr.mxu0 0.0
    %1712 = vmatpush1.xpose.msra.mxu0 0.0
    %1713 = vmatprep.subr.mxu0 0.0
    %1714 = vmatpush1.xpose.msra.mxu0 0.0
    %1715 = vmatprep.subr.mxu0 0.0
    %1716 = vmatpush1.xpose.msra.mxu0 0.0
    %1717 = vmatprep.subr.mxu0 0.0
    %1718 = vmatpush1.xpose.msra.mxu0 0.0
    %1719 = vmatprep.subr.mxu0 0.0
    %1720 = vmatpush1.xpose.msra.mxu0 0.0
    %1721 = vmatprep.subr.mxu0 0.0
    %1722 = vmatpush1.xpose.msra.mxu0 0.0
    %1723 = vmatprep.subr.mxu0 0.0
    %1724 = vmatpush1.xpose.msra.mxu0 0.0
    %1725 = vmatprep.subr.mxu0 0.0
    %1726 = vmatpush1.xpose.msra.mxu0 0.0
    %1727 = vmatprep.subr.mxu0 0.0
    %1728 = vmatpush1.xpose.msra.mxu0 0.0
    %1729 = vmatprep.subr.mxu0 0.0
    %1730 = vmatpush1.xpose.msra.mxu0 0.0
    %1731 = vmatprep.subr.mxu0 0.0
    %1732 = vmatpush1.xpose.msra.mxu0 0.0
    %1733 = vmatprep.subr.mxu0 0.0
    %1734 = vmatpush1.xpose.msra.mxu0 0.0
    %1735 = vmatprep.subr.mxu0 0.0
    %1736 = vmatpush1.xpose.msra.mxu0 0.0
    %1737 = vmatprep.mubr.f32.mxu0 0.0
    %1738 = vmatmul.mubr.f32.gmra.mrb[0].mxu0 %v1669
    %v1739 = vpop.f32.mrb[0].mxu0
    %v1740 = vadd.f32 0.0, %v1739
    %v1741 = vpop.f32.mrb[0].mxu0
    %1742 = vdwg.mxu0
    %v1743 = vmul.f32 %v1740, 0.35355338
    %v1744 = vadd.f32 %v1743, %v1181
    %v1745 = vsel %vm212, %v1744, -inf
    %1746 = vmax.xlane.f32.xlu0 %v1745
    %v1747 = vpop.xlane.xlu0 %1746
    %v1748 = vsub.f32 %v1744, %v1747
    %v1749 = vmul.f32 %v1748, 1.442695
    %v1750 = vpow.pop %v1749
    %v1751 = vsel %vm212, %v1750, 0.0
    %1752 = vadd.xlane.f32.xlu0 %v1751
    %v1753 = vpop.xlane.xlu0 %1752
    %v1754 = vrcp.pop %v1753
    %v1755 = vmul.f32 %v1750, %v1754
    %1756 = vrot.lane.b32.xlu0 %v203, 48
    %v1757 = vpop.permute.xlu0 %1756
    %v1760 = vsel %vm212, %v1755, 0
    %1762 = vmatprep.subr.mxu0 0.0
    %1763 = vmatpush1.msra.mxu0 %v1757
    %1764 = vmatprep.subr.mxu0 0.0
    %1765 = vmatpush1.msra.mxu0 0.0
    %1766 = vmatprep.subr.mxu0 0.0
    %1767 = vmatpush1.msra.mxu0 0.0
    %1768 = vmatprep.subr.mxu0 0.0
    %1769 = vmatpush1.msra.mxu0 0.0
    %1770 = vmatprep.subr.mxu0 0.0
    %1771 = vmatpush1.msra.mxu0 0.0
    %1772 = vmatprep.subr.mxu0 0.0
    %1773 = vmatpush1.msra.mxu0 0.0
    %1774 = vmatprep.subr.mxu0 0.0
    %1775 = vmatpush1.msra.mxu0 0.0
    %1776 = vmatprep.subr.mxu0 0.0
    %1777 = vmatpush1.msra.mxu0 0.0
    %1778 = vmatprep.subr.mxu0 0.0
    %1779 = vmatpush1.msra.mxu0 0.0
    %1780 = vmatprep.subr.mxu0 0.0
    %1781 = vmatpush1.msra.mxu0 0.0
    %1782 = vmatprep.subr.mxu0 0.0
    %1783 = vmatpush1.msra.mxu0 0.0
    %1784 = vmatprep.subr.mxu0 0.0
    %1785 = vmatpush1.msra.mxu0 0.0
    %1786 = vmatprep.subr.mxu0 0.0
    %1787 = vmatpush1.msra.mxu0 0.0
    %1788 = vmatprep.subr.mxu0 0.0
    %1789 = vmatpush1.msra.mxu0 0.0
    %1790 = vmatprep.subr.mxu0 0.0
    %1791 = vmatpush1.msra.mxu0 0.0
    %1792 = vmatprep.subr.mxu0 0.0
    %1793 = vmatpush1.msra.mxu0 0.0
    %1794 = vmatprep.subr.mxu0 0.0
    %1795 = vmatpush1.msra.mxu0 0.0
    %1796 = vmatprep.subr.mxu0 0.0
    %1797 = vmatpush1.msra.mxu0 0.0
    %1798 = vmatprep.subr.mxu0 0.0
    %1799 = vmatpush1.msra.mxu0 0.0
    %1800 = vmatprep.subr.mxu0 0.0
    %1801 = vmatpush1.msra.mxu0 0.0
    %1802 = vmatprep.subr.mxu0 0.0
    %1803 = vmatpush1.msra.mxu0 0.0
    %1804 = vmatprep.subr.mxu0 0.0
    %1805 = vmatpush1.msra.mxu0 0.0
    %1806 = vmatprep.subr.mxu0 0.0
    %1807 = vmatpush1.msra.mxu0 0.0
    %1808 = vmatprep.subr.mxu0 0.0
    %1809 = vmatpush1.msra.mxu0 0.0
    %1810 = vmatprep.subr.mxu0 0.0
    %1811 = vmatpush1.msra.mxu0 0.0
    %1812 = vmatprep.subr.mxu0 0.0
    %1813 = vmatpush1.msra.mxu0 0.0
    %1814 = vmatprep.subr.mxu0 0.0
    %1815 = vmatpush1.msra.mxu0 0.0
    %1816 = vmatprep.subr.mxu0 0.0
    %1817 = vmatpush1.msra.mxu0 0.0
    %1818 = vmatprep.subr.mxu0 0.0
    %1819 = vmatpush1.msra.mxu0 0.0
    %1820 = vmatprep.subr.mxu0 0.0
    %1821 = vmatpush1.msra.mxu0 0.0
    %1822 = vmatprep.subr.mxu0 0.0
    %1823 = vmatpush1.msra.mxu0 0.0
    %1824 = vmatprep.subr.mxu0 0.0
    %1825 = vmatpush1.msra.mxu0 0.0
    %1826 = vmatprep.mubr.f32.mxu0 0.0
    %1827 = vmatmul.mubr.f32.gmra.mrb[0].mxu0 %v1760
    %v1828 = vpop.f32.mrb[0].mxu0
    %v1829 = vadd.f32 0.0, %v1828
    %v1830 = vpop.f32.mrb[0].mxu0
    %1831 = vdwg.mxu0
    %v1832 = vld [vmem:[%s3 + $0x10] sm:$0xff]
    %v1834 = vsel %vm212, %v1829, 0
    %1836 = vmatprep.subr.mxu0 0.0
    %1837 = vmatpush1.msra.mxu0 %v1832
    %1838 = vmatprep.subr.mxu0 0.0
    %1839 = vmatpush1.msra.mxu0 0.0
    %1840 = vmatprep.subr.mxu0 0.0
    %1841 = vmatpush1.msra.mxu0 0.0
    %1842 = vmatprep.subr.mxu0 0.0
    %1843 = vmatpush1.msra.mxu0 0.0
    %1844 = vmatprep.subr.mxu0 0.0
    %1845 = vmatpush1.msra.mxu0 0.0
    %1846 = vmatprep.subr.mxu0 0.0
    %1847 = vmatpush1.msra.mxu0 0.0
    %1848 = vmatprep.subr.mxu0 0.0
    %1849 = vmatpush1.msra.mxu0 0.0
    %1850 = vmatprep.subr.mxu0 0.0
    %1851 = vmatpush1.msra.mxu0 0.0
    %1852 = vmatprep.subr.mxu0 0.0
    %1853 = vmatpush1.msra.mxu0 0.0
    %1854 = vmatprep.subr.mxu0 0.0
    %1855 = vmatpush1.msra.mxu0 0.0
    %1856 = vmatprep.subr.mxu0 0.0
    %1857 = vmatpush1.msra.mxu0 0.0
    %1858 = vmatprep.subr.mxu0 0.0
    %1859 = vmatpush1.msra.mxu0 0.0
    %1860 = vmatprep.subr.mxu0 0.0
    %1861 = vmatpush1.msra.mxu0 0.0
    %1862 = vmatprep.subr.mxu0 0.0
    %1863 = vmatpush1.msra.mxu0 0.0
    %1864 = vmatprep.subr.mxu0 0.0
    %1865 = vmatpush1.msra.mxu0 0.0
    %1866 = vmatprep.subr.mxu0 0.0
    %1867 = vmatpush1.msra.mxu0 0.0
    %1868 = vmatprep.subr.mxu0 0.0
    %1869 = vmatpush1.msra.mxu0 0.0
    %1870 = vmatprep.subr.mxu0 0.0
    %1871 = vmatpush1.msra.mxu0 0.0
    %1872 = vmatprep.subr.mxu0 0.0
    %1873 = vmatpush1.msra.mxu0 0.0
    %1874 = vmatprep.subr.mxu0 0.0
    %1875 = vmatpush1.msra.mxu0 0.0
    %1876 = vmatprep.subr.mxu0 0.0
    %1877 = vmatpush1.msra.mxu0 0.0
    %1878 = vmatprep.subr.mxu0 0.0
    %1879 = vmatpush1.msra.mxu0 0.0
    %1880 = vmatprep.subr.mxu0 0.0
    %1881 = vmatpush1.msra.mxu0 0.0
    %1882 = vmatprep.subr.mxu0 0.0
    %1883 = vmatpush1.msra.mxu0 0.0
    %1884 = vmatprep.subr.mxu0 0.0
    %1885 = vmatpush1.msra.mxu0 0.0
    %1886 = vmatprep.subr.mxu0 0.0
    %1887 = vmatpush1.msra.mxu0 0.0
    %1888 = vmatprep.subr.mxu0 0.0
    %1889 = vmatpush1.msra.mxu0 0.0
    %1890 = vmatprep.subr.mxu0 0.0
    %1891 = vmatpush1.msra.mxu0 0.0
    %1892 = vmatprep.subr.mxu0 0.0
    %1893 = vmatpush1.msra.mxu0 0.0
    %1894 = vmatprep.subr.mxu0 0.0
    %1895 = vmatpush1.msra.mxu0 0.0
    %1896 = vmatprep.subr.mxu0 0.0
    %1897 = vmatpush1.msra.mxu0 0.0
    %1898 = vmatprep.subr.mxu0 0.0
    %1899 = vmatpush1.msra.mxu0 0.0
    %1900 = vmatprep.mubr.f32.mxu0 0.0
    %1901 = vmatmul.mubr.f32.gmra.mrb[0].mxu0 %v1834
    %v1902 = vpop.f32.mrb[0].mxu0
    %v1903 = vadd.f32 0.0, %v1902
    %v1904 = vpop.f32.mrb[0].mxu0
    %1905 = vdwg.mxu0
    %v1906 = vadd.f32 %v1664, %v1903
    %1907 = vrot.lane.b32.xlu0 %v203, 104
    %v1908 = vpop.permute.xlu0 %1907
    %1909 = vrot.lane.b32.xlu0 %v203, 72
    %v1910 = vpop.permute.xlu0 %1909
    %v1911 = vsel %vm212, %v1908, 0
    %v1913 = vsel %vm212, %v1910, 0
    %1915 = vmatprep.subr.mxu0 0.0
    %1916 = vmatpush1.xpose.msra.mxu0 %v1913
    %1917 = vmatprep.subr.mxu0 0.0
    %1918 = vmatpush1.xpose.msra.mxu0 0.0
    %1919 = vmatprep.subr.mxu0 0.0
    %1920 = vmatpush1.xpose.msra.mxu0 0.0
    %1921 = vmatprep.subr.mxu0 0.0
    %1922 = vmatpush1.xpose.msra.mxu0 0.0
    %1923 = vmatprep.subr.mxu0 0.0
    %1924 = vmatpush1.xpose.msra.mxu0 0.0
    %1925 = vmatprep.subr.mxu0 0.0
    %1926 = vmatpush1.xpose.msra.mxu0 0.0
    %1927 = vmatprep.subr.mxu0 0.0
    %1928 = vmatpush1.xpose.msra.mxu0 0.0
    %1929 = vmatprep.subr.mxu0 0.0
    %1930 = vmatpush1.xpose.msra.mxu0 0.0
    %1931 = vmatprep.subr.mxu0 0.0
    %1932 = vmatpush1.xpose.msra.mxu0 0.0
    %1933 = vmatprep.subr.mxu0 0.0
    %1934 = vmatpush1.xpose.msra.mxu0 0.0
    %1935 = vmatprep.subr.mxu0 0.0
    %1936 = vmatpush1.xpose.msra.mxu0 0.0
    %1937 = vmatprep.subr.mxu0 0.0
    %1938 = vmatpush1.xpose.msra.mxu0 0.0
    %1939 = vmatprep.subr.mxu0 0.0
    %1940 = vmatpush1.xpose.msra.mxu0 0.0
    %1941 = vmatprep.subr.mxu0 0.0
    %1942 = vmatpush1.xpose.msra.mxu0 0.0
    %1943 = vmatprep.subr.mxu0 0.0
    %1944 = vmatpush1.xpose.msra.mxu0 0.0
    %1945 = vmatprep.subr.mxu0 0.0
    %1946 = vmatpush1.xpose.msra.mxu0 0.0
    %1947 = vmatprep.subr.mxu0 0.0
    %1948 = vmatpush1.xpose.msra.mxu0 0.0
    %1949 = vmatprep.subr.mxu0 0.0
    %1950 = vmatpush1.xpose.msra.mxu0 0.0
    %1951 = vmatprep.subr.mxu0 0.0
    %1952 = vmatpush1.xpose.msra.mxu0 0.0
    %1953 = vmatprep.subr.mxu0 0.0
    %1954 = vmatpush1.xpose.msra.mxu0 0.0
    %1955 = vmatprep.subr.mxu0 0.0
    %1956 = vmatpush1.xpose.msra.mxu0 0.0
    %1957 = vmatprep.subr.mxu0 0.0
    %1958 = vmatpush1.xpose.msra.mxu0 0.0
    %1959 = vmatprep.subr.mxu0 0.0
    %1960 = vmatpush1.xpose.msra.mxu0 0.0
    %1961 = vmatprep.subr.mxu0 0.0
    %1962 = vmatpush1.xpose.msra.mxu0 0.0
    %1963 = vmatprep.subr.mxu0 0.0
    %1964 = vmatpush1.xpose.msra.mxu0 0.0
    %1965 = vmatprep.subr.mxu0 0.0
    %1966 = vmatpush1.xpose.msra.mxu0 0.0
    %1967 = vmatprep.subr.mxu0 0.0
    %1968 = vmatpush1.xpose.msra.mxu0 0.0
    %1969 = vmatprep.subr.mxu0 0.0
    %1970 = vmatpush1.xpose.msra.mxu0 0.0
    %1971 = vmatprep.subr.mxu0 0.0
    %1972 = vmatpush1.xpose.msra.mxu0 0.0
    %1973 = vmatprep.subr.mxu0 0.0
    %1974 = vmatpush1.xpose.msra.mxu0 0.0
    %1975 = vmatprep.subr.mxu0 0.0
    %1976 = vmatpush1.xpose.msra.mxu0 0.0
    %1977 = vmatprep.subr.mxu0 0.0
    %1978 = vmatpush1.xpose.msra.mxu0 0.0
    %1979 = vmatprep.mubr.f32.mxu0 0.0
    %1980 = vmatmul.mubr.f32.gmra.mrb[0].mxu0 %v1911
    %v1981 = vpop.f32.mrb[0].mxu0
    %v1982 = vadd.f32 0.0, %v1981
    %v1983 = vpop.f32.mrb[0].mxu0
    %1984 = vdwg.mxu0
    %v1985 = vmul.f32 %v1982, 0.35355338
    %v1986 = vadd.f32 %v1985, %v1181
    %v1987 = vsel %vm212, %v1986, -inf
    %1988 = vmax.xlane.f32.xlu0 %v1987
    %v1989 = vpop.xlane.xlu0 %1988
    %v1990 = vsub.f32 %v1986, %v1989
    %v1991 = vmul.f32 %v1990, 1.442695
    %v1992 = vpow.pop %v1991
    %v1993 = vsel %vm212, %v1992, 0.0
    %1994 = vadd.xlane.f32.xlu0 %v1993
    %v1995 = vpop.xlane.xlu0 %1994
    %v1996 = vrcp.pop %v1995
    %v1997 = vmul.f32 %v1992, %v1996
    %1998 = vrot.lane.b32.xlu0 %v203, 40
    %v1999 = vpop.permute.xlu0 %1998
    %v2002 = vsel %vm212, %v1997, 0
    %2004 = vmatprep.subr.mxu0 0.0
    %2005 = vmatpush1.msra.mxu0 %v1999
    %2006 = vmatprep.subr.mxu0 0.0
    %2007 = vmatpush1.msra.mxu0 0.0
    %2008 = vmatprep.subr.mxu0 0.0
    %2009 = vmatpush1.msra.mxu0 0.0
    %2010 = vmatprep.subr.mxu0 0.0
    %2011 = vmatpush1.msra.mxu0 0.0
    %2012 = vmatprep.subr.mxu0 0.0
    %2013 = vmatpush1.msra.mxu0 0.0
    %2014 = vmatprep.subr.mxu0 0.0
    %2015 = vmatpush1.msra.mxu0 0.0
    %2016 = vmatprep.subr.mxu0 0.0
    %2017 = vmatpush1.msra.mxu0 0.0
    %2018 = vmatprep.subr.mxu0 0.0
    %2019 = vmatpush1.msra.mxu0 0.0
    %2020 = vmatprep.subr.mxu0 0.0
    %2021 = vmatpush1.msra.mxu0 0.0
    %2022 = vmatprep.subr.mxu0 0.0
    %2023 = vmatpush1.msra.mxu0 0.0
    %2024 = vmatprep.subr.mxu0 0.0
    %2025 = vmatpush1.msra.mxu0 0.0
    %2026 = vmatprep.subr.mxu0 0.0
    %2027 = vmatpush1.msra.mxu0 0.0
    %2028 = vmatprep.subr.mxu0 0.0
    %2029 = vmatpush1.msra.mxu0 0.0
    %2030 = vmatprep.subr.mxu0 0.0
    %2031 = vmatpush1.msra.mxu0 0.0
    %2032 = vmatprep.subr.mxu0 0.0
    %2033 = vmatpush1.msra.mxu0 0.0
    %2034 = vmatprep.subr.mxu0 0.0
    %2035 = vmatpush1.msra.mxu0 0.0
    %2036 = vmatprep.subr.mxu0 0.0
    %2037 = vmatpush1.msra.mxu0 0.0
    %2038 = vmatprep.subr.mxu0 0.0
    %2039 = vmatpush1.msra.mxu0 0.0
    %2040 = vmatprep.subr.mxu0 0.0
    %2041 = vmatpush1.msra.mxu0 0.0
    %2042 = vmatprep.subr.mxu0 0.0
    %2043 = vmatpush1.msra.mxu0 0.0
    %2044 = vmatprep.subr.mxu0 0.0
    %2045 = vmatpush1.msra.mxu0 0.0
    %2046 = vmatprep.subr.mxu0 0.0
    %2047 = vmatpush1.msra.mxu0 0.0
    %2048 = vmatprep.subr.mxu0 0.0
    %2049 = vmatpush1.msra.mxu0 0.0
    %2050 = vmatprep.subr.mxu0 0.0
    %2051 = vmatpush1.msra.mxu0 0.0
    %2052 = vmatprep.subr.mxu0 0.0
    %2053 = vmatpush1.msra.mxu0 0.0
    %2054 = vmatprep.subr.mxu0 0.0
    %2055 = vmatpush1.msra.mxu0 0.0
    %2056 = vmatprep.subr.mxu0 0.0
    %2057 = vmatpush1.msra.mxu0 0.0
    %2058 = vmatprep.subr.mxu0 0.0
    %2059 = vmatpush1.msra.mxu0 0.0
    %2060 = vmatprep.subr.mxu0 0.0
    %2061 = vmatpush1.msra.mxu0 0.0
    %2062 = vmatprep.subr.mxu0 0.0
    %2063 = vmatpush1.msra.mxu0 0.0
    %2064 = vmatprep.subr.mxu0 0.0
    %2065 = vmatpush1.msra.mxu0 0.0
    %2066 = vmatprep.subr.mxu0 0.0
    %2067 = vmatpush1.msra.mxu0 0.0
    %2068 = vmatprep.mubr.f32.mxu0 0.0
    %2069 = vmatmul.mubr.f32.gmra.mrb[0].mxu0 %v2002
    %v2070 = vpop.f32.mrb[0].mxu0
    %v2071 = vadd.f32 0.0, %v2070
    %v2072 = vpop.f32.mrb[0].mxu0
    %2073 = vdwg.mxu0
    %v2074 = vld [vmem:[%s3 + $0x18] sm:$0xff]
    %v2076 = vsel %vm212, %v2071, 0
    %2078 = vmatprep.subr.mxu0 0.0
    %2079 = vmatpush1.msra.mxu0 %v2074
    %2080 = vmatprep.subr.mxu0 0.0
    %2081 = vmatpush1.msra.mxu0 0.0
    %2082 = vmatprep.subr.mxu0 0.0
    %2083 = vmatpush1.msra.mxu0 0.0
    %2084 = vmatprep.subr.mxu0 0.0
    %2085 = vmatpush1.msra.mxu0 0.0
    %2086 = vmatprep.subr.mxu0 0.0
    %2087 = vmatpush1.msra.mxu0 0.0
    %2088 = vmatprep.subr.mxu0 0.0
    %2089 = vmatpush1.msra.mxu0 0.0
    %2090 = vmatprep.subr.mxu0 0.0
    %2091 = vmatpush1.msra.mxu0 0.0
    %2092 = vmatprep.subr.mxu0 0.0
    %2093 = vmatpush1.msra.mxu0 0.0
    %2094 = vmatprep.subr.mxu0 0.0
    %2095 = vmatpush1.msra.mxu0 0.0
    %2096 = vmatprep.subr.mxu0 0.0
    %2097 = vmatpush1.msra.mxu0 0.0
    %2098 = vmatprep.subr.mxu0 0.0
    %2099 = vmatpush1.msra.mxu0 0.0
    %2100 = vmatprep.subr.mxu0 0.0
    %2101 = vmatpush1.msra.mxu0 0.0
    %2102 = vmatprep.subr.mxu0 0.0
    %2103 = vmatpush1.msra.mxu0 0.0
    %2104 = vmatprep.subr.mxu0 0.0
    %2105 = vmatpush1.msra.mxu0 0.0
    %2106 = vmatprep.subr.mxu0 0.0
    %2107 = vmatpush1.msra.mxu0 0.0
    %2108 = vmatprep.subr.mxu0 0.0
    %2109 = vmatpush1.msra.mxu0 0.0
    %2110 = vmatprep.subr.mxu0 0.0
    %2111 = vmatpush1.msra.mxu0 0.0
    %2112 = vmatprep.subr.mxu0 0.0
    %2113 = vmatpush1.msra.mxu0 0.0
    %2114 = vmatprep.subr.mxu0 0.0
    %2115 = vmatpush1.msra.mxu0 0.0
    %2116 = vmatprep.subr.mxu0 0.0
    %2117 = vmatpush1.msra.mxu0 0.0
    %2118 = vmatprep.subr.mxu0 0.0
    %2119 = vmatpush1.msra.mxu0 0.0
    %2120 = vmatprep.subr.mxu0 0.0
    %2121 = vmatpush1.msra.mxu0 0.0
    %2122 = vmatprep.subr.mxu0 0.0
    %2123 = vmatpush1.msra.mxu0 0.0
    %2124 = vmatprep.subr.mxu0 0.0
    %2125 = vmatpush1.msra.mxu0 0.0
    %2126 = vmatprep.subr.mxu0 0.0
    %2127 = vmatpush1.msra.mxu0 0.0
    %2128 = vmatprep.subr.mxu0 0.0
    %2129 = vmatpush1.msra.mxu0 0.0
    %2130 = vmatprep.subr.mxu0 0.0
    %2131 = vmatpush1.msra.mxu0 0.0
    %2132 = vmatprep.subr.mxu0 0.0
    %2133 = vmatpush1.msra.mxu0 0.0
    %2134 = vmatprep.subr.mxu0 0.0
    %2135 = vmatpush1.msra.mxu0 0.0
    %2136 = vmatprep.subr.mxu0 0.0
    %2137 = vmatpush1.msra.mxu0 0.0
    %2138 = vmatprep.subr.mxu0 0.0
    %2139 = vmatpush1.msra.mxu0 0.0
    %2140 = vmatprep.subr.mxu0 0.0
    %2141 = vmatpush1.msra.mxu0 0.0
    %2142 = vmatprep.mubr.f32.mxu0 0.0
    %2143 = vmatmul.mubr.f32.gmra.mrb[0].mxu0 %v2076
    %v2144 = vpop.f32.mrb[0].mxu0
    %v2145 = vadd.f32 0.0, %v2144
    %v2146 = vpop.f32.mrb[0].mxu0
    %2147 = vdwg.mxu0
    %v2148 = vadd.f32 %v1906, %v2145
    %2149 = vst.msk [vmem:[#allocation7 + $0x8] sm:$0xff] %vm66, %v2148
    %v2150 = vld [vmem:[#allocation7] sm:$0xff]
    %v2151 = vld [vmem:[#allocation7 + $0x8] sm:$0xff]
    %v2152 = vsel %vm66, %v2150, 0.0
    %2153 = vadd.xlane.f32.xlu0 %v2152
    %v2154 = vpop.xlane.xlu0 %2153
    %v2155 = vsel %vm66, %v2151, 0.0
    %2156 = vadd.xlane.f32.xlu0 %v2155
    %v2157 = vpop.xlane.xlu0 %2156
    %v2158 = vmul.f32 %v2154, %v73
    %v2159 = vmul.f32 %v2157, %v73
    %v2160 = vsub.f32 %v2150, %v2158
    %v2161 = vsub.f32 %v2151, %v2159
    %v2162 = vmul.f32 %v2160, %v2160
    %v2163 = vmul.f32 %v2161, %v2161
    %v2164 = vsel %vm66, %v2162, 0.0
    %2165 = vadd.xlane.f32.xlu0 %v2164
    %v2166 = vpop.xlane.xlu0 %2165
    %v2167 = vsel %vm66, %v2163, 0.0
    %2168 = vadd.xlane.f32.xlu0 %v2167
    %v2169 = vpop.xlane.xlu0 %2168
    %v2170 = vmul.f32 %v2166, %v86
    %v2171 = vmul.f32 %v2169, %v86
    %v2172 = vrsqrt.pop %v2170
    %v2173 = vmul.f32 %v2170, %v2172
    %vm2174 = vcmp.eq.f32.partialorder %v2170, inf
    %v2175 = vsel %vm2174, %v2170, %v2173
    %vm2176 = vcmp.eq.f32.partialorder %v2170, 0.0
    %v2177 = vand.u32 %v2170, 2147483648
    %v2178 = vsel %vm2176, %v2177, %v2175
    %v2179 = vrsqrt.pop %v2171
    %v2180 = vmul.f32 %v2171, %v2179
    %vm2181 = vcmp.eq.f32.partialorder %v2171, inf
    %v2182 = vsel %vm2181, %v2171, %v2180
    %vm2183 = vcmp.eq.f32.partialorder %v2171, 0.0
    %v2184 = vand.u32 %v2171, 2147483648
    %v2185 = vsel %vm2183, %v2184, %v2182
    %v2186 = vadd.f32 %v2178, 1e-06
    %v2187 = vadd.f32 %v2185, 1e-06
    %v2188 = vrcp.pop %v2186
    %v2189 = vrcp.pop %v2187
    %v2190 = vlaneseq
    %v2191 = vshrl.u32 %v2190, 7
    %v2192 = vsub.s32 0, %v2191
    %v2193 = vrot.slane %v62, %v2192
    %v2194 = vmul.f32 %v2193, %v2160
    %v2195 = vmul.f32 %v2193, %v2161
    %v2196 = vmul.f32 %v2194, %v2188
    %v2197 = vmul.f32 %v2195, %v2189
    %v2198 = vlaneseq
    %v2199 = vshrl.u32 %v2198, 7
    %v2200 = vsub.s32 0, %v2199
    %v2201 = vrot.slane %v63, %v2200
    %v2202 = vadd.f32 %v2196, %v2201
    %v2203 = vadd.f32 %v2197, %v2201
    %v2204 = vld [vmem:[%s4] sm:$0xff]
    %v2205 = vld [vmem:[%s4 + $0x8] sm:$0xff]
    %v2206 = vld [vmem:[%s4 + $0x10] sm:$0xff]
    %v2207 = vld [vmem:[%s4 + $0x18] sm:$0xff]
    %v2209 = vlaneseq
    %v2210 = vshrl.u32 %v2209, 7
    %v2211 = vsub.s32 0, %v2210
    %v2212 = vrot.slane %v65, %v2211
    %v2215 = vsel %vm66, %v2202, 0
    %v2218 = vsel %vm66, %v2203, 0
    %2220 = vmatprep.subr.mxu0 0.0
    %2221 = vmatpush1.msra.mxu0 %v2204
    %2222 = vmatprep.subr.mxu0 0.0
    %2223 = vmatpush1.msra.mxu0 %v2205
    %2224 = vmatprep.subr.mxu0 0.0
    %2225 = vmatpush1.msra.mxu0 %v2206
    %2226 = vmatprep.subr.mxu0 0.0
    %2227 = vmatpush1.msra.mxu0 %v2207
    %2228 = vmatprep.subr.mxu0 0.0
    %2229 = vmatpush1.msra.mxu0 0.0
    %2230 = vmatprep.subr.mxu0 0.0
    %2231 = vmatpush1.msra.mxu0 0.0
    %2232 = vmatprep.subr.mxu0 0.0
    %2233 = vmatpush1.msra.mxu0 0.0
    %2234 = vmatprep.subr.mxu0 0.0
    %2235 = vmatpush1.msra.mxu0 0.0
    %2236 = vmatprep.subr.mxu0 0.0
    %2237 = vmatpush1.msra.mxu0 0.0
    %2238 = vmatprep.subr.mxu0 0.0
    %2239 = vmatpush1.msra.mxu0 0.0
    %2240 = vmatprep.subr.mxu0 0.0
    %2241 = vmatpush1.msra.mxu0 0.0
    %2242 = vmatprep.subr.mxu0 0.0
    %2243 = vmatpush1.msra.mxu0 0.0
    %2244 = vmatprep.subr.mxu0 0.0
    %2245 = vmatpush1.msra.mxu0 0.0
    %2246 = vmatprep.subr.mxu0 0.0
    %2247 = vmatpush1.msra.mxu0 0.0
    %2248 = vmatprep.subr.mxu0 0.0
    %2249 = vmatpush1.msra.mxu0 0.0
    %2250 = vmatprep.subr.mxu0 0.0
    %2251 = vmatpush1.msra.mxu0 0.0
    %2252 = vmatprep.subr.mxu0 0.0
    %2253 = vmatpush1.msra.mxu0 0.0
    %2254 = vmatprep.subr.mxu0 0.0
    %2255 = vmatpush1.msra.mxu0 0.0
    %2256 = vmatprep.subr.mxu0 0.0
    %2257 = vmatpush1.msra.mxu0 0.0
    %2258 = vmatprep.subr.mxu0 0.0
    %2259 = vmatpush1.msra.mxu0 0.0
    %2260 = vmatprep.subr.mxu0 0.0
    %2261 = vmatpush1.msra.mxu0 0.0
    %2262 = vmatprep.subr.mxu0 0.0
    %2263 = vmatpush1.msra.mxu0 0.0
    %2264 = vmatprep.subr.mxu0 0.0
    %2265 = vmatpush1.msra.mxu0 0.0
    %2266 = vmatprep.subr.mxu0 0.0
    %2267 = vmatpush1.msra.mxu0 0.0
    %2268 = vmatprep.subr.mxu0 0.0
    %2269 = vmatpush1.msra.mxu0 0.0
    %2270 = vmatprep.subr.mxu0 0.0
    %2271 = vmatpush1.msra.mxu0 0.0
    %2272 = vmatprep.subr.mxu0 0.0
    %2273 = vmatpush1.msra.mxu0 0.0
    %2274 = vmatprep.subr.mxu0 0.0
    %2275 = vmatpush1.msra.mxu0 0.0
    %2276 = vmatprep.subr.mxu0 0.0
    %2277 = vmatpush1.msra.mxu0 0.0
    %2278 = vmatprep.subr.mxu0 0.0
    %2279 = vmatpush1.msra.mxu0 0.0
    %2280 = vmatprep.subr.mxu0 0.0
    %2281 = vmatpush1.msra.mxu0 0.0
    %2282 = vmatprep.subr.mxu0 0.0
    %2283 = vmatpush1.msra.mxu0 0.0
    %2284 = vmatprep.mubr.f32.mxu0 0.0
    %2285 = vmatmul.mubr.f32.gmra.mrb[0].mxu0 %v2215
    %v2286 = vpop.f32.mrb[0].mxu0
    %v2287 = vadd.f32 %v2212, %v2286
    %v2288 = vpop.f32.mrb[0].mxu0
    %2289 = vmatprep.mubr.f32.mxu0 0.0
    %2290 = vmatmul.mubr.f32.gmra.mrb[0].mxu0 %v2218
    %v2291 = vpop.f32.mrb[0].mxu0
    %v2292 = vadd.f32 %v2212, %v2291
    %v2293 = vpop.f32.mrb[0].mxu0
    %2294 = vdwg.mxu0
    %v2295 = vmax.f32 %v2287, 0.0
    %v2296 = vmax.f32 %v2292, 0.0
    %v2297 = vld [vmem:[%s5] sm:$0xff]
    %v2298 = vld [vmem:[%s5 + $0x8] sm:$0xff]
    %v2299 = vld [vmem:[%s5 + $0x10] sm:$0xff]
    %v2300 = vld [vmem:[%s5 + $0x18] sm:$0xff]
    %v2301 = vld [vmem:[%s5 + $0x20] sm:$0xff]
    %v2302 = vld [vmem:[%s5 + $0x28] sm:$0xff]
    %v2303 = vld [vmem:[%s5 + $0x30] sm:$0xff]
    %v2304 = vld [vmem:[%s5 + $0x38] sm:$0xff]
    %v2305 = vlaneseq
    %v2306 = vshrl.u32 %v2305, 7
    %v2307 = vsub.s32 0, %v2306
    %v2308 = vrot.slane %v64, %v2307
    %vm2309 = vcmask 523264
    %v2311 = vsel %vm2309, %v2295, 0
    %v2314 = vsel %vm2309, %v2296, 0
    %2316 = vmatprep.subr.mxu0 0.0
    %2317 = vmatpush1.msra.mxu0 %v2297
    %2318 = vmatprep.subr.mxu0 0.0
    %2319 = vmatpush1.msra.mxu0 %v2298
    %2320 = vmatprep.subr.mxu0 0.0
    %2321 = vmatpush1.msra.mxu0 %v2299
    %2322 = vmatprep.subr.mxu0 0.0
    %2323 = vmatpush1.msra.mxu0 %v2300
    %2324 = vmatprep.subr.mxu0 0.0
    %2325 = vmatpush1.msra.mxu0 %v2301
    %2326 = vmatprep.subr.mxu0 0.0
    %2327 = vmatpush1.msra.mxu0 %v2302
    %2328 = vmatprep.subr.mxu0 0.0
    %2329 = vmatpush1.msra.mxu0 %v2303
    %2330 = vmatprep.subr.mxu0 0.0
    %2331 = vmatpush1.msra.mxu0 %v2304
    %2332 = vmatprep.subr.mxu0 0.0
    %2333 = vmatpush1.msra.mxu0 0.0
    %2334 = vmatprep.subr.mxu0 0.0
    %2335 = vmatpush1.msra.mxu0 0.0
    %2336 = vmatprep.subr.mxu0 0.0
    %2337 = vmatpush1.msra.mxu0 0.0
    %2338 = vmatprep.subr.mxu0 0.0
    %2339 = vmatpush1.msra.mxu0 0.0
    %2340 = vmatprep.subr.mxu0 0.0
    %2341 = vmatpush1.msra.mxu0 0.0
    %2342 = vmatprep.subr.mxu0 0.0
    %2343 = vmatpush1.msra.mxu0 0.0
    %2344 = vmatprep.subr.mxu0 0.0
    %2345 = vmatpush1.msra.mxu0 0.0
    %2346 = vmatprep.subr.mxu0 0.0
    %2347 = vmatpush1.msra.mxu0 0.0
    %2348 = vmatprep.subr.mxu0 0.0
    %2349 = vmatpush1.msra.mxu0 0.0
    %2350 = vmatprep.subr.mxu0 0.0
    %2351 = vmatpush1.msra.mxu0 0.0
    %2352 = vmatprep.subr.mxu0 0.0
    %2353 = vmatpush1.msra.mxu0 0.0
    %2354 = vmatprep.subr.mxu0 0.0
    %2355 = vmatpush1.msra.mxu0 0.0
    %2356 = vmatprep.subr.mxu0 0.0
    %2357 = vmatpush1.msra.mxu0 0.0
    %2358 = vmatprep.subr.mxu0 0.0
    %2359 = vmatpush1.msra.mxu0 0.0
    %2360 = vmatprep.subr.mxu0 0.0
    %2361 = vmatpush1.msra.mxu0 0.0
    %2362 = vmatprep.subr.mxu0 0.0
    %2363 = vmatpush1.msra.mxu0 0.0
    %2364 = vmatprep.subr.mxu0 0.0
    %2365 = vmatpush1.msra.mxu0 0.0
    %2366 = vmatprep.subr.mxu0 0.0
    %2367 = vmatpush1.msra.mxu0 0.0
    %2368 = vmatprep.subr.mxu0 0.0
    %2369 = vmatpush1.msra.mxu0 0.0
    %2370 = vmatprep.subr.mxu0 0.0
    %2371 = vmatpush1.msra.mxu0 0.0
    %2372 = vmatprep.subr.mxu0 0.0
    %2373 = vmatpush1.msra.mxu0 0.0
    %2374 = vmatprep.subr.mxu0 0.0
    %2375 = vmatpush1.msra.mxu0 0.0
    %2376 = vmatprep.subr.mxu0 0.0
    %2377 = vmatpush1.msra.mxu0 0.0
    %2378 = vmatprep.subr.mxu0 0.0
    %2379 = vmatpush1.msra.mxu0 0.0
    %2380 = vmatprep.mubr.f32.mxu0 0.0
    %2381 = vmatmul.mubr.f32.gmra.mrb[0].mxu0 %v2311
    %v2382 = vpop.f32.mrb[0].mxu0
    %v2383 = vadd.f32 %v2308, %v2382
    %v2384 = vpop.f32.mrb[0].mxu0
    %2385 = vmatprep.mubr.f32.mxu0 0.0
    %2386 = vmatmul.mubr.f32.gmra.mrb[0].mxu0 %v2314
    %v2387 = vpop.f32.mrb[0].mxu0
    %v2388 = vadd.f32 %v2308, %v2387
    %v2389 = vpop.f32.mrb[0].mxu0
    %2390 = vdwg.mxu0
    %v2391 = vadd.f32 %v2150, %v2383
    %v2392 = vadd.f32 %v2151, %v2388
    %2393 = vst.msk [vmem:[#allocation7] sm:$0xff] %vm66, %v2391
    %2394 = vst.msk [vmem:[#allocation7 + $0x8] sm:$0xff] %vm66, %v2392
    // Predicated region
    $region42: #{tpu_custom_call.1} parent=1 // pred_check
      _
    $region43: #{tpu_custom_call.1} parent=1 // pred_check_branch
      %2396 = sbr.rel (0) target = $region45
    $region44: #{tpu_custom_call.1} parent=1 // pred_region
      %s2398 = ssub.s32 256, 256
      %2399 = vsyncadd [#allocation4], %s2398
      %s2400 = sshll.u32 [#allocation7], 4
      %s2401 = int_to_ptr.vmem [resolvable:$true] %s2400
      %2406 = dma.vmem_to_hbm [thread:$0]  %s2401, 256, %s8, [#allocation4], 128, 128, 8
    $region45: #{tpu_custom_call.1} parent=1 // pred_fallthru
      _
    // Predicated region
    $region46: #{tpu_custom_call.1} parent=1 // pred_check
      _
    $region47: #{tpu_custom_call.1} parent=1 // pred_check_branch
      %2408 = sbr.rel (0) target = $region49
    $region48: #{tpu_custom_call.1} parent=1 // pred_region
      %2409 = dma.done [#allocation4], 256
    $region49: #{tpu_custom_call.1} parent=1 // pred_fallthru
      _
    %2410 = vsyncpa [#allocation3], 1
    %2411 = vsyncpa [#allocation6], 1
    %2412 = vsyncpa [#allocation4], 1

</llo_original>
